<compile_context>
chip_gen: v7x
topology: tpu7x:2x2x1
jax: 0.10.0
libtpu: 0.0.40
codegen_flags: <defaults>
</compile_context>

<pallas_src>
import functools
import math

import jax
import jax.numpy as jnp
from jax import lax
from jax.experimental import pallas as pl
from jax.experimental.pallas import tpu as pltpu

# ---- toy config, consistent with GPTConfig (n_embd % n_head == 0) ----
B = 2            # batch
T = 8            # sequence length == block_size
C = 32           # n_embd
N_HEAD = 4       # n_head
HEAD_DIM = C // N_HEAD
N_LAYER = 2      # n_layer
VOCAB = 128      # vocab_size (toy)

_NEG = -1e30     # large finite negative instead of -inf (NaN-safe masking)
_LN_EPS = 1e-5   # torch.nn.LayerNorm default


def _layer_norm(x, w, b):
    mu = jnp.mean(x, axis=-1, keepdims=True)
    xc = x - mu
    var = jnp.mean(xc * xc, axis=-1, keepdims=True)
    return xc * lax.rsqrt(var + _LN_EPS) * w + b


def _gelu_tanh(x):
    # nn.GELU(approximate='tanh')
    c = math.sqrt(2.0 / math.pi)
    return 0.5 * x * (1.0 + jnp.tanh(c * (x + 0.044715 * x * x * x)))


# --------------------------------------------------------------------------
# Fused transformer Block kernel: one grid step == one batch element.
# --------------------------------------------------------------------------
def _block_kernel(x_ref,
                  ln1w_ref, ln1b_ref, wqkv_ref, bqkv_ref, wproj_ref, bproj_ref,
                  ln2w_ref, ln2b_ref, wfc_ref, bfc_ref, wfp_ref, bfp_ref,
                  o_ref, y_scratch, *, seq, emb, n_head):
    head_dim = emb // n_head
    x = x_ref[0]                                            # (T, C)

    # ---- ln_1 + c_attn: one deep matmul over all T rows ----
    h = _layer_norm(x, ln1w_ref[...], ln1b_ref[...])
    qkv = jnp.dot(h, wqkv_ref[...],
                  preferred_element_type=jnp.float32) + bqkv_ref[...]
    q = qkv[:, 0 * emb:1 * emb] * (1.0 / math.sqrt(head_dim))  # scale folded into q
    k = qkv[:, 1 * emb:2 * emb]
    v = qkv[:, 2 * emb:3 * emb]

    # Per-batch causal mask (T, T) — no batch flattening.
    row = lax.broadcasted_iota(jnp.int32, (seq, seq), 0)
    col = lax.broadcasted_iota(jnp.int32, (seq, seq), 1)
    mask = row >= col

    # ---- per-head attention; head outputs merged into one (T, C) buffer ----
    for hd in range(n_head):
        lo, hi = hd * head_dim, (hd + 1) * head_dim
        # QK^T with the contraction fed straight to the MXU (no k transpose).
        s = lax.dot_general(q[:, lo:hi], k[:, lo:hi],
                            (((1,), (1,)), ((), ())),
                            preferred_element_type=jnp.float32)   # (T, T)
        s = jnp.where(mask, s, _NEG)
        m = jnp.max(s, axis=-1, keepdims=True)
        p = jnp.exp(s - m)
        l = jnp.sum(p, axis=-1, keepdims=True)
        inv_l = pl.reciprocal(l, approx=True)                      # EUP slot
        # Normalization deferred past PV (scales T*D values, not T*T probs).
        oh = jnp.dot(p, v[:, lo:hi],
                     preferred_element_type=jnp.float32) * inv_l   # (T, D)
        y_scratch[:, lo:hi] = oh

    # ---- single deep output projection (K = C) + residual ----
    y = y_scratch[...]                                      # (T, C)
    x = x + jnp.dot(y, wproj_ref[...],
                    preferred_element_type=jnp.float32) + bproj_ref[...]

    # ---- ln_2 + MLP + residual ----
    h2 = _layer_norm(x, ln2w_ref[...], ln2b_ref[...])
    a = jnp.dot(h2, wfc_ref[...],
                preferred_element_type=jnp.float32) + bfc_ref[...]
    a = _gelu_tanh(a)
    x = x + jnp.dot(a, wfp_ref[...],
                    preferred_element_type=jnp.float32) + bfp_ref[...]

    o_ref[0] = x.astype(o_ref.dtype)


def transformer_block(x, lp):
    """x: (B, T, C); lp: dict of per-layer weights (already in x@W layout)."""
    Bx, Tx, Cx = x.shape
    kernel = functools.partial(_block_kernel, seq=Tx, emb=Cx, n_head=N_HEAD)
    weights = (lp["ln1_w"], lp["ln1_b"], lp["w_qkv"], lp["b_qkv"],
               lp["w_proj"], lp["b_proj"], lp["ln2_w"], lp["ln2_b"],
               lp["w_fc"], lp["b_fc"], lp["w_fcproj"], lp["b_fcproj"])
    # Constant index maps -> each weight is DMA'd into VMEM once.
    w_specs = [pl.BlockSpec(w.shape, lambda b: (0, 0)) for w in weights]
    return pl.pallas_call(
        kernel,
        out_shape=jax.ShapeDtypeStruct((Bx, Tx, Cx), x.dtype),
        grid=(Bx,),
        in_specs=[pl.BlockSpec((1, Tx, Cx), lambda b: (b, 0, 0))] + w_specs,
        out_specs=pl.BlockSpec((1, Tx, Cx), lambda b: (b, 0, 0)),
        scratch_shapes=[pltpu.VMEM((Tx, Cx), jnp.float32)],
        compiler_params=pltpu.CompilerParams(
            dimension_semantics=("parallel",)),   # v7x: 2 TCs can split batch
    )(x, *weights)


# --------------------------------------------------------------------------
# Fused ln_f + tied lm_head kernel (logits = ln_f(x) @ wte^T, no transpose).
# --------------------------------------------------------------------------
def _lm_head_kernel(x_ref, lnfw_ref, lnfb_ref, wte_ref, o_ref):
    h = _layer_norm(x_ref[...], lnfw_ref[...], lnfb_ref[...])
    o_ref[...] = lax.dot_general(
        h, wte_ref[...], (((1,), (1,)), ((), ())),
        preferred_element_type=jnp.float32).astype(o_ref.dtype)


def lm_head(x2d, lnf_w, lnf_b, wte):
    BT, _ = x2d.shape
    V = wte.shape[0]
    return pl.pallas_call(
        _lm_head_kernel,
        out_shape=jax.ShapeDtypeStruct((BT, V), x2d.dtype),
        in_specs=[pl.BlockSpec(memory_space=pltpu.MemorySpace.VMEM)] * 4,
        out_specs=pl.BlockSpec(memory_space=pltpu.MemorySpace.VMEM),
    )(x2d, lnf_w, lnf_b, wte)


# --------------------------------------------------------------------------
# Full GPT forward (logits only; no loss / sampling).
# --------------------------------------------------------------------------
def gpt_forward(idx, params):
    Bx, Tx = idx.shape
    wte, wpe = params["wte"], params["wpe"]
    # TODO(synk): embedding gather (wte[idx] + wpe) kept in plain JAX; a
    # data-dependent DMA-gather kernel (scalar-prefetched row indices) would
    # be needed for a fully-Pallas path.
    x = wte[idx] + wpe[:Tx][None]
    for lp in params["layers"]:
        x = transformer_block(x, lp)
    logits2d = lm_head(x.reshape(Bx * Tx, -1),
                       params["lnf_w"], params["lnf_b"], wte)
    return logits2d.reshape(Bx, Tx, -1)


# --------------------------------------------------------------------------
# Pure-JAX reference matching the PyTorch forward.
# --------------------------------------------------------------------------
def reference_gpt(idx, params):
    Bx, Tx = idx.shape
    wte, wpe = params["wte"], params["wpe"]
    x = wte[idx] + wpe[:Tx][None]
    for lp in params["layers"]:
        h = _layer_norm(x, lp["ln1_w"], lp["ln1_b"])
        qkv = h @ lp["w_qkv"] + lp["b_qkv"]
        q, k, v = jnp.split(qkv, 3, axis=-1)

        def heads(t):
            return t.reshape(Bx, Tx, N_HEAD, HEAD_DIM).transpose(0, 2, 1, 3)

        qh, kh, vh = heads(q), heads(k), heads(v)
        s = jnp.einsum("bhtd,bhsd->bhts", qh, kh) / math.sqrt(HEAD_DIM)
        mask = jnp.tril(jnp.ones((Tx, Tx), dtype=bool))
        s = jnp.where(mask[None, None], s, -jnp.inf)
        p = jax.nn.softmax(s, axis=-1)
        y = jnp.einsum("bhts,bhsd->bhtd", p, vh)
        y = y.transpose(0, 2, 1, 3).reshape(Bx, Tx, C)
        x = x + y @ lp["w_proj"] + lp["b_proj"]

        h2 = _layer_norm(x, lp["ln2_w"], lp["ln2_b"])
        a = _gelu_tanh(h2 @ lp["w_fc"] + lp["b_fc"])
        x = x + a @ lp["w_fcproj"] + lp["b_fcproj"]
    x = _layer_norm(x, params["lnf_w"], params["lnf_b"])
    return x @ wte.T


def init_params(key):
    ks = jax.random.split(key, 4 + N_LAYER)
    std = 0.02
    proj_std = std * (2 * N_LAYER) ** -0.5        # NANOGPT_SCALE_INIT
    f32 = jnp.float32
    wte = jax.random.normal(ks[0], (VOCAB, C), f32) * std
    wpe = jax.random.normal(ks[1], (T, C), f32) * std
    lnf_w = 1.0 + 0.1 * jax.random.normal(ks[2], (1, C), f32)
    lnf_b = 0.1 * jax.random.normal(ks[3], (1, C), f32)
    layers = []
    for i in range(N_LAYER):
        lk = jax.random.split(ks[4 + i], 10)
        layers.append(dict(
            ln1_w=1.0 + 0.1 * jax.random.normal(lk[0], (1, C), f32),
            ln1_b=0.1 * jax.random.normal(lk[1], (1, C), f32),
            # nn.Linear weights stored pre-transposed to (in, out) for x @ W.
            w_qkv=jax.random.normal(lk[2], (C, 3 * C), f32) * std,
            b_qkv=jax.random.normal(lk[3], (1, 3 * C), f32) * std,
            w_proj=jax.random.normal(lk[4], (C, C), f32) * proj_std,
            b_proj=jax.random.normal(lk[5], (1, C), f32) * std,
            ln2_w=1.0 + 0.1 * jax.random.normal(lk[6], (1, C), f32),
            ln2_b=0.1 * jax.random.normal(lk[7], (1, C), f32),
            w_fc=jax.random.normal(lk[8], (C, 4 * C), f32) * std,
            b_fc=jnp.zeros((1, 4 * C), f32),
            w_fcproj=jax.random.normal(lk[9], (4 * C, C), f32) * proj_std,
            b_fcproj=jnp.zeros((1, C), f32),
        ))
    return dict(wte=wte, wpe=wpe, layers=layers, lnf_w=lnf_w, lnf_b=lnf_b)


if __name__ == "__main__":
    key = jax.random.PRNGKey(0)
    kp, kidx = jax.random.split(key)
    params = init_params(kp)
    idx = jax.random.randint(kidx, (B, T), 0, VOCAB)

    logits = gpt_forward(idx, params)
    logits = jax.block_until_ready(logits)

    ref = reference_gpt(idx, params)
    assert logits.shape == (B, T, VOCAB)
    # approx=True reciprocal in the softmax denominator -> ~1e-3 tolerance.
    err = float(jnp.max(jnp.abs(logits - ref)))
    assert jnp.allclose(logits, ref, atol=2e-3, rtol=2e-3), f"mismatch: {err}"

    print("KERNEL_OK")
</pallas_src>

<mosaic_0001>
module attributes {stable_mosaic.version = 11 : i64} {
  func.func @_block_kernel(%arg0: i32, %arg1: memref<1x8x32xf32, #tpu.memory_space<vmem>>, %arg2: memref<1x32xf32, #tpu.memory_space<vmem>>, %arg3: memref<1x32xf32, #tpu.memory_space<vmem>>, %arg4: memref<32x96xf32, #tpu.memory_space<vmem>>, %arg5: memref<1x96xf32, #tpu.memory_space<vmem>>, %arg6: memref<32x32xf32, #tpu.memory_space<vmem>>, %arg7: memref<1x32xf32, #tpu.memory_space<vmem>>, %arg8: memref<1x32xf32, #tpu.memory_space<vmem>>, %arg9: memref<1x32xf32, #tpu.memory_space<vmem>>, %arg10: memref<32x128xf32, #tpu.memory_space<vmem>>, %arg11: memref<1x128xf32, #tpu.memory_space<vmem>>, %arg12: memref<128x32xf32, #tpu.memory_space<vmem>>, %arg13: memref<1x32xf32, #tpu.memory_space<vmem>>, %arg14: memref<1x8x32xf32, #tpu.memory_space<vmem>>, %arg15: memref<8x32xf32, #tpu.memory_space<vmem>>) attributes {dimension_semantics = [#tpu.dimension_semantics<parallel>], iteration_bounds = array<i64: 2>, scalar_prefetch = 0 : i64, scratch_operands = 1 : i64, tpu.core_type = #tpu.core_type<tc>, window_params = [{transform_indices = @transform_0, window_bounds = array<i64: 1, 8, 32>}, {pipeline_mode = #tpu.pipeline_mode<synchronous>, transform_indices = @transform_1, window_bounds = array<i64: 1, 32>}, {pipeline_mode = #tpu.pipeline_mode<synchronous>, transform_indices = @transform_2, window_bounds = array<i64: 1, 32>}, {pipeline_mode = #tpu.pipeline_mode<synchronous>, transform_indices = @transform_3, window_bounds = array<i64: 32, 96>}, {pipeline_mode = #tpu.pipeline_mode<synchronous>, transform_indices = @transform_4, window_bounds = array<i64: 1, 96>}, {pipeline_mode = #tpu.pipeline_mode<synchronous>, transform_indices = @transform_5, window_bounds = array<i64: 32, 32>}, {pipeline_mode = #tpu.pipeline_mode<synchronous>, transform_indices = @transform_6, window_bounds = array<i64: 1, 32>}, {pipeline_mode = #tpu.pipeline_mode<synchronous>, transform_indices = @transform_7, window_bounds = array<i64: 1, 32>}, {pipeline_mode = #tpu.pipeline_mode<synchronous>, transform_indices = @transform_8, window_bounds = array<i64: 1, 32>}, {pipeline_mode = #tpu.pipeline_mode<synchronous>, transform_indices = @transform_9, window_bounds = array<i64: 32, 128>}, {pipeline_mode = #tpu.pipeline_mode<synchronous>, transform_indices = @transform_10, window_bounds = array<i64: 1, 128>}, {pipeline_mode = #tpu.pipeline_mode<synchronous>, transform_indices = @transform_11, window_bounds = array<i64: 128, 32>}, {pipeline_mode = #tpu.pipeline_mode<synchronous>, transform_indices = @transform_12, window_bounds = array<i64: 1, 32>}, {transform_indices = @transform_13, window_bounds = array<i64: 1, 8, 32>}]} {
    %c0 = arith.constant 0 : index
    %c0_0 = arith.constant 0 : index
    %c0_1 = arith.constant 0 : index
    %0 = vector.load %arg1[%c0, %c0_0, %c0_1] : memref<1x8x32xf32, #tpu.memory_space<vmem>>, vector<1x8x32xf32>
    %1 = vector.shape_cast %0 : vector<1x8x32xf32> to vector<8x32xf32>
    %c0_2 = arith.constant 0 : index
    %c0_3 = arith.constant 0 : index
    %2 = vector.load %arg2[%c0_2, %c0_3] : memref<1x32xf32, #tpu.memory_space<vmem>>, vector<1x32xf32>
    %c0_4 = arith.constant 0 : index
    %c0_5 = arith.constant 0 : index
    %3 = vector.load %arg3[%c0_4, %c0_5] : memref<1x32xf32, #tpu.memory_space<vmem>>, vector<1x32xf32>
    %cst = arith.constant dense<0.000000e+00> : vector<8xf32>
    %4 = vector.multi_reduction <add>, %1, %cst [1] : vector<8x32xf32> to vector<8xf32>
    %5 = vector.shape_cast %4 : vector<8xf32> to vector<8x1xf32>
    %cst_6 = arith.constant 3.200000e+01 : f32
    %6 = vector.broadcast %cst_6 : f32 to vector<8x1xf32>
    %7 = arith.divf %5, %6 : vector<8x1xf32>
    %8 = vector.broadcast %7 : vector<8x1xf32> to vector<8x32xf32>
    %9 = arith.subf %1, %8 : vector<8x32xf32>
    %10 = arith.mulf %9, %9 : vector<8x32xf32>
    %cst_7 = arith.constant dense<0.000000e+00> : vector<8xf32>
    %11 = vector.multi_reduction <add>, %10, %cst_7 [1] : vector<8x32xf32> to vector<8xf32>
    %12 = vector.shape_cast %11 : vector<8xf32> to vector<8x1xf32>
    %cst_8 = arith.constant 3.200000e+01 : f32
    %13 = vector.broadcast %cst_8 : f32 to vector<8x1xf32>
    %14 = arith.divf %12, %13 : vector<8x1xf32>
    %cst_9 = arith.constant 9.99999974E-6 : f32
    %15 = vector.broadcast %cst_9 : f32 to vector<8x1xf32>
    %16 = arith.addf %14, %15 : vector<8x1xf32>
    %17 = math.rsqrt %16 : vector<8x1xf32>
    %18 = vector.broadcast %17 : vector<8x1xf32> to vector<8x32xf32>
    %19 = arith.mulf %9, %18 : vector<8x32xf32>
    %20 = vector.broadcast %2 : vector<1x32xf32> to vector<8x32xf32>
    %21 = arith.mulf %19, %20 : vector<8x32xf32>
    %22 = vector.broadcast %3 : vector<1x32xf32> to vector<8x32xf32>
    %23 = arith.addf %21, %22 : vector<8x32xf32>
    %c0_10 = arith.constant 0 : index
    %c0_11 = arith.constant 0 : index
    %24 = vector.load %arg4[%c0_10, %c0_11] : memref<32x96xf32, #tpu.memory_space<vmem>>, vector<32x96xf32>
    %cst_12 = arith.constant dense<0.000000e+00> : vector<8x96xf32>
    %25 = tpu.matmul %23, %24, %cst_12 {dimension_numbers = #tpu.dot_dimension_numbers<[1], [0], [0], [1], [0, 0, 1, 1], [], []>} : vector<8x32xf32>, vector<32x96xf32>, vector<8x96xf32> -> vector<8x96xf32>
    %c0_13 = arith.constant 0 : index
    %c0_14 = arith.constant 0 : index
    %26 = vector.load %arg5[%c0_13, %c0_14] : memref<1x96xf32, #tpu.memory_space<vmem>>, vector<1x96xf32>
    %27 = vector.broadcast %26 : vector<1x96xf32> to vector<8x96xf32>
    %28 = arith.addf %25, %27 : vector<8x96xf32>
    %29 = vector.extract_strided_slice %28 {offsets = [0, 0], sizes = [8, 32], strides = [1, 1]} : vector<8x96xf32> to vector<8x32xf32>
    %cst_15 = arith.constant 0.353553385 : f32
    %30 = vector.broadcast %cst_15 : f32 to vector<8x32xf32>
    %31 = arith.mulf %29, %30 : vector<8x32xf32>
    %32 = vector.extract_strided_slice %28 {offsets = [0, 32], sizes = [8, 32], strides = [1, 1]} : vector<8x96xf32> to vector<8x32xf32>
    %33 = vector.extract_strided_slice %28 {offsets = [0, 64], sizes = [8, 32], strides = [1, 1]} : vector<8x96xf32> to vector<8x32xf32>
    %34 = tpu.iota {dimensions = array<i32: 0>} : vector<8x8xi32>
    %35 = tpu.iota {dimensions = array<i32: 1>} : vector<8x8xi32>
    %36 = arith.cmpi sge, %34, %35 : vector<8x8xi32>
    %37 = vector.extract_strided_slice %31 {offsets = [0, 0], sizes = [8, 8], strides = [1, 1]} : vector<8x32xf32> to vector<8x8xf32>
    %38 = vector.extract_strided_slice %32 {offsets = [0, 0], sizes = [8, 8], strides = [1, 1]} : vector<8x32xf32> to vector<8x8xf32>
    %cst_16 = arith.constant dense<0.000000e+00> : vector<8x8xf32>
    %39 = tpu.matmul %37, %38, %cst_16 {dimension_numbers = #tpu.dot_dimension_numbers<[1], [1], [0], [0], [0, 0, 1, 0], [], []>} : vector<8x8xf32>, vector<8x8xf32>, vector<8x8xf32> -> vector<8x8xf32>
    %cst_17 = arith.constant -1.000000e+30 : f32
    %40 = vector.broadcast %cst_17 : f32 to vector<8x8xf32>
    %41 = arith.select %36, %39, %40 : vector<8x8xi1>, vector<8x8xf32>
    %cst_18 = arith.constant dense<0xFF800000> : vector<8xf32>
    %42 = vector.multi_reduction <maximumf>, %41, %cst_18 [1] : vector<8x8xf32> to vector<8xf32>
    %43 = vector.shape_cast %42 : vector<8xf32> to vector<8x1xf32>
    %44 = vector.broadcast %43 : vector<8x1xf32> to vector<8x8xf32>
    %45 = arith.subf %41, %44 : vector<8x8xf32>
    %46 = math.exp %45 : vector<8x8xf32>
    %cst_19 = arith.constant dense<0.000000e+00> : vector<8xf32>
    %47 = vector.multi_reduction <add>, %46, %cst_19 [1] : vector<8x8xf32> to vector<8xf32>
    %48 = vector.shape_cast %47 : vector<8xf32> to vector<8x1xf32>
    %49 = tpu.reciprocal %48 {approx = true} : vector<8x1xf32> -> vector<8x1xf32>
    %50 = vector.extract_strided_slice %33 {offsets = [0, 0], sizes = [8, 8], strides = [1, 1]} : vector<8x32xf32> to vector<8x8xf32>
    %cst_20 = arith.constant dense<0.000000e+00> : vector<8x8xf32>
    %51 = tpu.matmul %46, %50, %cst_20 {dimension_numbers = #tpu.dot_dimension_numbers<[1], [0], [0], [1], [0, 0, 1, 1], [], []>} : vector<8x8xf32>, vector<8x8xf32>, vector<8x8xf32> -> vector<8x8xf32>
    %52 = vector.broadcast %49 : vector<8x1xf32> to vector<8x8xf32>
    %53 = arith.mulf %51, %52 : vector<8x8xf32>
    %c0_21 = arith.constant 0 : index
    %c0_22 = arith.constant 0 : index
    %54 = vector.load %arg15[%c0_21, %c0_22] : memref<8x32xf32, #tpu.memory_space<vmem>>, vector<8x8xf32>
    tpu.vector_store %arg15[%c0_21, %c0_22], %53 {strides = array<i32>} : memref<8x32xf32, #tpu.memory_space<vmem>>, vector<8x8xf32>,
    %55 = vector.extract_strided_slice %31 {offsets = [0, 8], sizes = [8, 8], strides = [1, 1]} : vector<8x32xf32> to vector<8x8xf32>
    %56 = vector.extract_strided_slice %32 {offsets = [0, 8], sizes = [8, 8], strides = [1, 1]} : vector<8x32xf32> to vector<8x8xf32>
    %cst_23 = arith.constant dense<0.000000e+00> : vector<8x8xf32>
    %57 = tpu.matmul %55, %56, %cst_23 {dimension_numbers = #tpu.dot_dimension_numbers<[1], [1], [0], [0], [0, 0, 1, 0], [], []>} : vector<8x8xf32>, vector<8x8xf32>, vector<8x8xf32> -> vector<8x8xf32>
    %cst_24 = arith.constant -1.000000e+30 : f32
    %58 = vector.broadcast %cst_24 : f32 to vector<8x8xf32>
    %59 = arith.select %36, %57, %58 : vector<8x8xi1>, vector<8x8xf32>
    %cst_25 = arith.constant dense<0xFF800000> : vector<8xf32>
    %60 = vector.multi_reduction <maximumf>, %59, %cst_25 [1] : vector<8x8xf32> to vector<8xf32>
    %61 = vector.shape_cast %60 : vector<8xf32> to vector<8x1xf32>
    %62 = vector.broadcast %61 : vector<8x1xf32> to vector<8x8xf32>
    %63 = arith.subf %59, %62 : vector<8x8xf32>
    %64 = math.exp %63 : vector<8x8xf32>
    %cst_26 = arith.constant dense<0.000000e+00> : vector<8xf32>
    %65 = vector.multi_reduction <add>, %64, %cst_26 [1] : vector<8x8xf32> to vector<8xf32>
    %66 = vector.shape_cast %65 : vector<8xf32> to vector<8x1xf32>
    %67 = tpu.reciprocal %66 {approx = true} : vector<8x1xf32> -> vector<8x1xf32>
    %68 = vector.extract_strided_slice %33 {offsets = [0, 8], sizes = [8, 8], strides = [1, 1]} : vector<8x32xf32> to vector<8x8xf32>
    %cst_27 = arith.constant dense<0.000000e+00> : vector<8x8xf32>
    %69 = tpu.matmul %64, %68, %cst_27 {dimension_numbers = #tpu.dot_dimension_numbers<[1], [0], [0], [1], [0, 0, 1, 1], [], []>} : vector<8x8xf32>, vector<8x8xf32>, vector<8x8xf32> -> vector<8x8xf32>
    %70 = vector.broadcast %67 : vector<8x1xf32> to vector<8x8xf32>
    %71 = arith.mulf %69, %70 : vector<8x8xf32>
    %c0_28 = arith.constant 0 : index
    %c8 = arith.constant 8 : index
    %72 = vector.load %arg15[%c0_28, %c8] : memref<8x32xf32, #tpu.memory_space<vmem>>, vector<8x8xf32>
    tpu.vector_store %arg15[%c0_28, %c8], %71 {strides = array<i32>} : memref<8x32xf32, #tpu.memory_space<vmem>>, vector<8x8xf32>,
    %73 = vector.extract_strided_slice %31 {offsets = [0, 16], sizes = [8, 8], strides = [1, 1]} : vector<8x32xf32> to vector<8x8xf32>
    %74 = vector.extract_strided_slice %32 {offsets = [0, 16], sizes = [8, 8], strides = [1, 1]} : vector<8x32xf32> to vector<8x8xf32>
    %cst_29 = arith.constant dense<0.000000e+00> : vector<8x8xf32>
    %75 = tpu.matmul %73, %74, %cst_29 {dimension_numbers = #tpu.dot_dimension_numbers<[1], [1], [0], [0], [0, 0, 1, 0], [], []>} : vector<8x8xf32>, vector<8x8xf32>, vector<8x8xf32> -> vector<8x8xf32>
    %cst_30 = arith.constant -1.000000e+30 : f32
    %76 = vector.broadcast %cst_30 : f32 to vector<8x8xf32>
    %77 = arith.select %36, %75, %76 : vector<8x8xi1>, vector<8x8xf32>
    %cst_31 = arith.constant dense<0xFF800000> : vector<8xf32>
    %78 = vector.multi_reduction <maximumf>, %77, %cst_31 [1] : vector<8x8xf32> to vector<8xf32>
    %79 = vector.shape_cast %78 : vector<8xf32> to vector<8x1xf32>
    %80 = vector.broadcast %79 : vector<8x1xf32> to vector<8x8xf32>
    %81 = arith.subf %77, %80 : vector<8x8xf32>
    %82 = math.exp %81 : vector<8x8xf32>
    %cst_32 = arith.constant dense<0.000000e+00> : vector<8xf32>
    %83 = vector.multi_reduction <add>, %82, %cst_32 [1] : vector<8x8xf32> to vector<8xf32>
    %84 = vector.shape_cast %83 : vector<8xf32> to vector<8x1xf32>
    %85 = tpu.reciprocal %84 {approx = true} : vector<8x1xf32> -> vector<8x1xf32>
    %86 = vector.extract_strided_slice %33 {offsets = [0, 16], sizes = [8, 8], strides = [1, 1]} : vector<8x32xf32> to vector<8x8xf32>
    %cst_33 = arith.constant dense<0.000000e+00> : vector<8x8xf32>
    %87 = tpu.matmul %82, %86, %cst_33 {dimension_numbers = #tpu.dot_dimension_numbers<[1], [0], [0], [1], [0, 0, 1, 1], [], []>} : vector<8x8xf32>, vector<8x8xf32>, vector<8x8xf32> -> vector<8x8xf32>
    %88 = vector.broadcast %85 : vector<8x1xf32> to vector<8x8xf32>
    %89 = arith.mulf %87, %88 : vector<8x8xf32>
    %c0_34 = arith.constant 0 : index
    %c16 = arith.constant 16 : index
    %90 = vector.load %arg15[%c0_34, %c16] : memref<8x32xf32, #tpu.memory_space<vmem>>, vector<8x8xf32>
    tpu.vector_store %arg15[%c0_34, %c16], %89 {strides = array<i32>} : memref<8x32xf32, #tpu.memory_space<vmem>>, vector<8x8xf32>,
    %91 = vector.extract_strided_slice %31 {offsets = [0, 24], sizes = [8, 8], strides = [1, 1]} : vector<8x32xf32> to vector<8x8xf32>
    %92 = vector.extract_strided_slice %32 {offsets = [0, 24], sizes = [8, 8], strides = [1, 1]} : vector<8x32xf32> to vector<8x8xf32>
    %cst_35 = arith.constant dense<0.000000e+00> : vector<8x8xf32>
    %93 = tpu.matmul %91, %92, %cst_35 {dimension_numbers = #tpu.dot_dimension_numbers<[1], [1], [0], [0], [0, 0, 1, 0], [], []>} : vector<8x8xf32>, vector<8x8xf32>, vector<8x8xf32> -> vector<8x8xf32>
    %cst_36 = arith.constant -1.000000e+30 : f32
    %94 = vector.broadcast %cst_36 : f32 to vector<8x8xf32>
    %95 = arith.select %36, %93, %94 : vector<8x8xi1>, vector<8x8xf32>
    %cst_37 = arith.constant dense<0xFF800000> : vector<8xf32>
    %96 = vector.multi_reduction <maximumf>, %95, %cst_37 [1] : vector<8x8xf32> to vector<8xf32>
    %97 = vector.shape_cast %96 : vector<8xf32> to vector<8x1xf32>
    %98 = vector.broadcast %97 : vector<8x1xf32> to vector<8x8xf32>
    %99 = arith.subf %95, %98 : vector<8x8xf32>
    %100 = math.exp %99 : vector<8x8xf32>
    %cst_38 = arith.constant dense<0.000000e+00> : vector<8xf32>
    %101 = vector.multi_reduction <add>, %100, %cst_38 [1] : vector<8x8xf32> to vector<8xf32>
    %102 = vector.shape_cast %101 : vector<8xf32> to vector<8x1xf32>
    %103 = tpu.reciprocal %102 {approx = true} : vector<8x1xf32> -> vector<8x1xf32>
    %104 = vector.extract_strided_slice %33 {offsets = [0, 24], sizes = [8, 8], strides = [1, 1]} : vector<8x32xf32> to vector<8x8xf32>
    %cst_39 = arith.constant dense<0.000000e+00> : vector<8x8xf32>
    %105 = tpu.matmul %100, %104, %cst_39 {dimension_numbers = #tpu.dot_dimension_numbers<[1], [0], [0], [1], [0, 0, 1, 1], [], []>} : vector<8x8xf32>, vector<8x8xf32>, vector<8x8xf32> -> vector<8x8xf32>
    %106 = vector.broadcast %103 : vector<8x1xf32> to vector<8x8xf32>
    %107 = arith.mulf %105, %106 : vector<8x8xf32>
    %c0_40 = arith.constant 0 : index
    %c24 = arith.constant 24 : index
    %108 = vector.load %arg15[%c0_40, %c24] : memref<8x32xf32, #tpu.memory_space<vmem>>, vector<8x8xf32>
    tpu.vector_store %arg15[%c0_40, %c24], %107 {strides = array<i32>} : memref<8x32xf32, #tpu.memory_space<vmem>>, vector<8x8xf32>,
    %c0_41 = arith.constant 0 : index
    %c0_42 = arith.constant 0 : index
    %109 = vector.load %arg15[%c0_41, %c0_42] : memref<8x32xf32, #tpu.memory_space<vmem>>, vector<8x32xf32>
    %c0_43 = arith.constant 0 : index
    %c0_44 = arith.constant 0 : index
    %110 = vector.load %arg6[%c0_43, %c0_44] : memref<32x32xf32, #tpu.memory_space<vmem>>, vector<32x32xf32>
    %cst_45 = arith.constant dense<0.000000e+00> : vector<8x32xf32>
    %111 = tpu.matmul %109, %110, %cst_45 {dimension_numbers = #tpu.dot_dimension_numbers<[1], [0], [0], [1], [0, 0, 1, 1], [], []>} : vector<8x32xf32>, vector<32x32xf32>, vector<8x32xf32> -> vector<8x32xf32>
    %112 = arith.addf %1, %111 : vector<8x32xf32>
    %c0_46 = arith.constant 0 : index
    %c0_47 = arith.constant 0 : index
    %113 = vector.load %arg7[%c0_46, %c0_47] : memref<1x32xf32, #tpu.memory_space<vmem>>, vector<1x32xf32>
    %114 = vector.broadcast %113 : vector<1x32xf32> to vector<8x32xf32>
    %115 = arith.addf %112, %114 : vector<8x32xf32>
    %c0_48 = arith.constant 0 : index
    %c0_49 = arith.constant 0 : index
    %116 = vector.load %arg8[%c0_48, %c0_49] : memref<1x32xf32, #tpu.memory_space<vmem>>, vector<1x32xf32>
    %c0_50 = arith.constant 0 : index
    %c0_51 = arith.constant 0 : index
    %117 = vector.load %arg9[%c0_50, %c0_51] : memref<1x32xf32, #tpu.memory_space<vmem>>, vector<1x32xf32>
    %cst_52 = arith.constant dense<0.000000e+00> : vector<8xf32>
    %118 = vector.multi_reduction <add>, %115, %cst_52 [1] : vector<8x32xf32> to vector<8xf32>
    %119 = vector.shape_cast %118 : vector<8xf32> to vector<8x1xf32>
    %cst_53 = arith.constant 3.200000e+01 : f32
    %120 = vector.broadcast %cst_53 : f32 to vector<8x1xf32>
    %121 = arith.divf %119, %120 : vector<8x1xf32>
    %122 = vector.broadcast %121 : vector<8x1xf32> to vector<8x32xf32>
    %123 = arith.subf %115, %122 : vector<8x32xf32>
    %124 = arith.mulf %123, %123 : vector<8x32xf32>
    %cst_54 = arith.constant dense<0.000000e+00> : vector<8xf32>
    %125 = vector.multi_reduction <add>, %124, %cst_54 [1] : vector<8x32xf32> to vector<8xf32>
    %126 = vector.shape_cast %125 : vector<8xf32> to vector<8x1xf32>
    %cst_55 = arith.constant 3.200000e+01 : f32
    %127 = vector.broadcast %cst_55 : f32 to vector<8x1xf32>
    %128 = arith.divf %126, %127 : vector<8x1xf32>
    %cst_56 = arith.constant 9.99999974E-6 : f32
    %129 = vector.broadcast %cst_56 : f32 to vector<8x1xf32>
    %130 = arith.addf %128, %129 : vector<8x1xf32>
    %131 = math.rsqrt %130 : vector<8x1xf32>
    %132 = vector.broadcast %131 : vector<8x1xf32> to vector<8x32xf32>
    %133 = arith.mulf %123, %132 : vector<8x32xf32>
    %134 = vector.broadcast %116 : vector<1x32xf32> to vector<8x32xf32>
    %135 = arith.mulf %133, %134 : vector<8x32xf32>
    %136 = vector.broadcast %117 : vector<1x32xf32> to vector<8x32xf32>
    %137 = arith.addf %135, %136 : vector<8x32xf32>
    %c0_57 = arith.constant 0 : index
    %c0_58 = arith.constant 0 : index
    %138 = vector.load %arg10[%c0_57, %c0_58] : memref<32x128xf32, #tpu.memory_space<vmem>>, vector<32x128xf32>
    %cst_59 = arith.constant dense<0.000000e+00> : vector<8x128xf32>
    %139 = tpu.matmul %137, %138, %cst_59 {dimension_numbers = #tpu.dot_dimension_numbers<[1], [0], [0], [1], [0, 0, 1, 1], [], []>} : vector<8x32xf32>, vector<32x128xf32>, vector<8x128xf32> -> vector<8x128xf32>
    %c0_60 = arith.constant 0 : index
    %c0_61 = arith.constant 0 : index
    %140 = vector.load %arg11[%c0_60, %c0_61] : memref<1x128xf32, #tpu.memory_space<vmem>>, vector<1x128xf32>
    %141 = vector.broadcast %140 : vector<1x128xf32> to vector<8x128xf32>
    %142 = arith.addf %139, %141 : vector<8x128xf32>
    %cst_62 = arith.constant 5.000000e-01 : f32
    %143 = vector.broadcast %cst_62 : f32 to vector<8x128xf32>
    %144 = arith.mulf %143, %142 : vector<8x128xf32>
    %cst_63 = arith.constant 4.471500e-02 : f32
    %145 = vector.broadcast %cst_63 : f32 to vector<8x128xf32>
    %146 = arith.mulf %145, %142 : vector<8x128xf32>
    %147 = arith.mulf %146, %142 : vector<8x128xf32>
    %148 = arith.mulf %147, %142 : vector<8x128xf32>
    %149 = arith.addf %142, %148 : vector<8x128xf32>
    %cst_64 = arith.constant 0.797884583 : f32
    %150 = vector.broadcast %cst_64 : f32 to vector<8x128xf32>
    %151 = arith.mulf %150, %149 : vector<8x128xf32>
    %152 = math.tanh %151 : vector<8x128xf32>
    %cst_65 = arith.constant 1.000000e+00 : f32
    %153 = vector.broadcast %cst_65 : f32 to vector<8x128xf32>
    %154 = arith.addf %153, %152 : vector<8x128xf32>
    %155 = arith.mulf %144, %154 : vector<8x128xf32>
    %c0_66 = arith.constant 0 : index
    %c0_67 = arith.constant 0 : index
    %156 = vector.load %arg12[%c0_66, %c0_67] : memref<128x32xf32, #tpu.memory_space<vmem>>, vector<128x32xf32>
    %cst_68 = arith.constant dense<0.000000e+00> : vector<8x32xf32>
    %157 = tpu.matmul %155, %156, %cst_68 {dimension_numbers = #tpu.dot_dimension_numbers<[1], [0], [0], [1], [0, 0, 1, 1], [], []>} : vector<8x128xf32>, vector<128x32xf32>, vector<8x32xf32> -> vector<8x32xf32>
    %158 = arith.addf %115, %157 : vector<8x32xf32>
    %c0_69 = arith.constant 0 : index
    %c0_70 = arith.constant 0 : index
    %159 = vector.load %arg13[%c0_69, %c0_70] : memref<1x32xf32, #tpu.memory_space<vmem>>, vector<1x32xf32>
    %160 = vector.broadcast %159 : vector<1x32xf32> to vector<8x32xf32>
    %161 = arith.addf %158, %160 : vector<8x32xf32>
    %c0_71 = arith.constant 0 : index
    %c0_72 = arith.constant 0 : index
    %c0_73 = arith.constant 0 : index
    %162 = vector.load %arg14[%c0_71, %c0_72, %c0_73] : memref<1x8x32xf32, #tpu.memory_space<vmem>>, vector<1x8x32xf32>
    %163 = vector.shape_cast %162 : vector<1x8x32xf32> to vector<8x32xf32>
    %164 = vector.shape_cast %161 : vector<8x32xf32> to vector<1x8x32xf32>
    tpu.vector_store %arg14[%c0_71, %c0_72, %c0_73], %164 {strides = array<i32>} : memref<1x8x32xf32, #tpu.memory_space<vmem>>, vector<1x8x32xf32>,
    return
  }
  func.func @transform_0(%arg0: i32) -> (i32, i32, i32) {
    %c0_i32 = arith.constant 0 : i32
    %c0_i32_0 = arith.constant 0 : i32
    %c0_i32_1 = arith.constant 0 : i32
    return %arg0, %c0_i32, %c0_i32_0 : i32, i32, i32
  }
  func.func @transform_1(%arg0: i32) -> (i32, i32) {
    %c0_i32 = arith.constant 0 : i32
    %c0_i32_0 = arith.constant 0 : i32
    %c0_i32_1 = arith.constant 0 : i32
    return %c0_i32, %c0_i32_0 : i32, i32
  }
  func.func @transform_2(%arg0: i32) -> (i32, i32) {
    %c0_i32 = arith.constant 0 : i32
    %c0_i32_0 = arith.constant 0 : i32
    %c0_i32_1 = arith.constant 0 : i32
    return %c0_i32, %c0_i32_0 : i32, i32
  }
  func.func @transform_3(%arg0: i32) -> (i32, i32) {
    %c0_i32 = arith.constant 0 : i32
    %c0_i32_0 = arith.constant 0 : i32
    %c0_i32_1 = arith.constant 0 : i32
    return %c0_i32, %c0_i32_0 : i32, i32
  }
  func.func @transform_4(%arg0: i32) -> (i32, i32) {
    %c0_i32 = arith.constant 0 : i32
    %c0_i32_0 = arith.constant 0 : i32
    %c0_i32_1 = arith.constant 0 : i32
    return %c0_i32, %c0_i32_0 : i32, i32
  }
  func.func @transform_5(%arg0: i32) -> (i32, i32) {
    %c0_i32 = arith.constant 0 : i32
    %c0_i32_0 = arith.constant 0 : i32
    %c0_i32_1 = arith.constant 0 : i32
    return %c0_i32, %c0_i32_0 : i32, i32
  }
  func.func @transform_6(%arg0: i32) -> (i32, i32) {
    %c0_i32 = arith.constant 0 : i32
    %c0_i32_0 = arith.constant 0 : i32
    %c0_i32_1 = arith.constant 0 : i32
    return %c0_i32, %c0_i32_0 : i32, i32
  }
  func.func @transform_7(%arg0: i32) -> (i32, i32) {
    %c0_i32 = arith.constant 0 : i32
    %c0_i32_0 = arith.constant 0 : i32
    %c0_i32_1 = arith.constant 0 : i32
    return %c0_i32, %c0_i32_0 : i32, i32
  }
  func.func @transform_8(%arg0: i32) -> (i32, i32) {
    %c0_i32 = arith.constant 0 : i32
    %c0_i32_0 = arith.constant 0 : i32
    %c0_i32_1 = arith.constant 0 : i32
    return %c0_i32, %c0_i32_0 : i32, i32
  }
  func.func @transform_9(%arg0: i32) -> (i32, i32) {
    %c0_i32 = arith.constant 0 : i32
    %c0_i32_0 = arith.constant 0 : i32
    %c0_i32_1 = arith.constant 0 : i32
    return %c0_i32, %c0_i32_0 : i32, i32
  }
  func.func @transform_10(%arg0: i32) -> (i32, i32) {
    %c0_i32 = arith.constant 0 : i32
    %c0_i32_0 = arith.constant 0 : i32
    %c0_i32_1 = arith.constant 0 : i32
    return %c0_i32, %c0_i32_0 : i32, i32
  }
  func.func @transform_11(%arg0: i32) -> (i32, i32) {
    %c0_i32 = arith.constant 0 : i32
    %c0_i32_0 = arith.constant 0 : i32
    %c0_i32_1 = arith.constant 0 : i32
    return %c0_i32, %c0_i32_0 : i32, i32
  }
  func.func @transform_12(%arg0: i32) -> (i32, i32) {
    %c0_i32 = arith.constant 0 : i32
    %c0_i32_0 = arith.constant 0 : i32
    %c0_i32_1 = arith.constant 0 : i32
    return %c0_i32, %c0_i32_0 : i32, i32
  }
  func.func @transform_13(%arg0: i32) -> (i32, i32, i32) {
    %c0_i32 = arith.constant 0 : i32
    %c0_i32_0 = arith.constant 0 : i32
    %c0_i32_1 = arith.constant 0 : i32
    return %arg0, %c0_i32, %c0_i32_0 : i32, i32, i32
  }
}

</mosaic_0001>

<llo_original>
// kernel: tpu_custom_call.1
$region0: #{tpu_custom_call.1}
  #allocation0 [shape = 'u32[]', space=smem, size = 0x4, offset = 0x4, fixed_abs, tag = 'smem constant byte address 0x4 - core index']
  #allocation1 [shape = 'u32[144,128]{1,0:T(1,128)}', space=vmem, size = 0x12000, scoped, tag = 'internal scratch']
  #allocation2 [shape = 'f32[8,32]{1,0:T(8,128)}', space=vmem, size = 0x1000, scoped, tag = 'scratch operand']
  %s0 = inlined_call_operand.vmem [shape: f32[2,8,32], index: 0, kind: input, shape index: {}]
  %s1 = inlined_call_operand.vmem [shape: f32[1,32], index: 1, kind: input, shape index: {}]
  %s2 = inlined_call_operand.vmem [shape: f32[1,32], index: 2, kind: input, shape index: {}]
  %s3 = inlined_call_operand.vmem [shape: f32[32,96], index: 3, kind: input, shape index: {}]
  %s4 = inlined_call_operand.vmem [shape: f32[1,96], index: 4, kind: input, shape index: {}]
  %s5 = inlined_call_operand.vmem [shape: f32[32,32], index: 5, kind: input, shape index: {}]
  %s6 = inlined_call_operand.vmem [shape: f32[1,32], index: 6, kind: input, shape index: {}]
  %s7 = inlined_call_operand.vmem [shape: f32[1,32], index: 7, kind: input, shape index: {}]
  %s8 = inlined_call_operand.vmem [shape: f32[1,32], index: 8, kind: input, shape index: {}]
  %s9 = inlined_call_operand.vmem [shape: f32[32,128], index: 9, kind: input, shape index: {}]
  %s10 = inlined_call_operand.vmem [shape: f32[1,128], index: 10, kind: input, shape index: {}]
  %s11 = inlined_call_operand.vmem [shape: f32[128,32], index: 11, kind: input, shape index: {}]
  %s12 = inlined_call_operand.vmem [shape: f32[1,32], index: 12, kind: input, shape index: {}]
  %s13 = inlined_call_operand.hbm [shape: f32[2,8,32], index: 13, kind: output, shape index: {}]
  %s14 = sld [smem:[#allocation0]]
  $region85: #{tpu_custom_call.1} parent=0
    _
  %s16 = ssub.s32 1, %s14
  %s17 = scalar_select 0, %s16, %s14
  $region1: #{tpu_custom_call.1} parent=0
    #allocation3 [shape = 'u8[8192]{0}', space=vmem, size = 0x2000, scoped, tag = 'output window, operand 0']
    #allocation4 [shape = 's32[2]{0}', space=sflag, size = 0x8, scoped, tag = 'scoped memory for tpu_custom_call.1']
    %18 = vsyncpa [#allocation4], 0
    %s19 = scalar_lea.sflag [#allocation4], 1
    %20 = vsyncpa %s19, 0
    loop: start=0, step=1, limit=4
    $region2: #{tpu_custom_call.1} parent=1 // loop_pre_header
      _
    $region3: #{tpu_custom_call.1} parent=1 // loop_header
      %s22 = sphi 0, %s26
      %p23 = scmp.ge.s32.totalorder %s22, 4
      %s32 = sphi 0, %s34
      %s35 = sphi 0, %s32
      %s36 = sphi 0, %s35
      %s52 = sphi 0, %s36
      %s56 = sphi 0, %s56
      %s58 = sphi 0, %s56
      %s59 = sphi 0, %s58
      %s73 = sphi 0, %s59
      %s77 = sphi 0, %s77
      %s79 = sphi 0, %s77
      %s80 = sphi 0, %s79
      %s94 = sphi 0, %s80
      %s98 = sphi 0, %s98
      %s100 = sphi 0, %s98
      %s101 = sphi 0, %s100
      %s115 = sphi 0, %s101
      %s119 = sphi 0, %s119
      %s121 = sphi 0, %s119
      %s122 = sphi 0, %s121
      %s136 = sphi 0, %s122
      %s140 = sphi 0, %s140
      %s142 = sphi 0, %s140
      %s143 = sphi 0, %s142
      %s157 = sphi 0, %s143
      %s161 = sphi 0, %s161
      %s163 = sphi 0, %s161
      %s164 = sphi 0, %s163
      %s178 = sphi 0, %s164
      %s182 = sphi 0, %s182
      %s184 = sphi 0, %s182
      %s185 = sphi 0, %s184
      %s199 = sphi 0, %s185
      %s203 = sphi 0, %s203
      %s205 = sphi 0, %s203
      %s206 = sphi 0, %s205
      %s220 = sphi 0, %s206
      %s224 = sphi 0, %s224
      %s226 = sphi 0, %s224
      %s227 = sphi 0, %s226
      %s241 = sphi 0, %s227
      %s245 = sphi 0, %s245
      %s247 = sphi 0, %s245
      %s248 = sphi 0, %s247
      %s262 = sphi 0, %s248
      %s266 = sphi 0, %s266
      %s268 = sphi 0, %s266
      %s269 = sphi 0, %s268
      %s283 = sphi 0, %s269
      %s287 = sphi 0, %s287
      %s289 = sphi 0, %s287
      %s290 = sphi 0, %s289
      %s304 = sphi 0, %s290
      %s310 = sphi 0, %s312
      %s313 = sphi 0, %s310
      %s314 = sphi 0, %s313
      %s330 = sphi 0, %s314
    $region4: #{tpu_custom_call.1} parent=1 // loop_header_branch
      %25 = sbr.rel (%p23) target = $region8
    $region5: #{tpu_custom_call.1} parent=1 // loop_body
      %s27 = ssub.s32 %s22, 1
      %s28 = ssub.s32 %s22, 2
      %s29 = sadd.s32 %s22, 1
      %s30 = ssub.s32 %s22, %s29
      %p31 = scmp.eq.s32.totalorder %s30, 0
      %s33 = sadd.s32 %s32, 1
      %s34 = scalar_select %p31, %s32, %s33
      %p37 = pneg %p31
      %p38 = scmp.eq.s32.totalorder %s22, 1
      %p39 = por %p37, %p38
      %p40 = scmp.ne.s32.totalorder %s32, %s35
      %p41 = scmp.eq.s32.totalorder %s22, 0
      %p42 = por %p40, %p41
      %p43 = scmp.ne.s32.totalorder %s32, %s35
      %p44 = scmp.eq.s32.totalorder %s27, 1
      %p45 = por %p43, %p44
      %p46 = scmp.ne.s32.totalorder %s35, %s36
      %p47 = scmp.eq.s32.totalorder %s27, 0
      %p48 = por %p46, %p47
      %p49 = scmp.ne.s32.totalorder %s35, %s36
      %p50 = scmp.eq.s32.totalorder %s28, 1
      %p51 = por %p49, %p50
      %p53 = scmp.ne.s32.totalorder %s36, %s52
      %p54 = scmp.eq.s32.totalorder %s28, 0
      %p55 = por %p53, %p54
      %s57 = sadd.s32 %s56, 1
      %p60 = scmp.eq.s32.totalorder %s22, 1
      %p61 = scmp.ne.s32.totalorder %s56, %s58
      %p62 = scmp.eq.s32.totalorder %s22, 0
      %p63 = por %p61, %p62
      %p64 = scmp.ne.s32.totalorder %s56, %s58
      %p65 = scmp.eq.s32.totalorder %s27, 1
      %p66 = por %p64, %p65
      %p67 = scmp.ne.s32.totalorder %s58, %s59
      %p68 = scmp.eq.s32.totalorder %s27, 0
      %p69 = por %p67, %p68
      %p70 = scmp.ne.s32.totalorder %s58, %s59
      %p71 = scmp.eq.s32.totalorder %s28, 1
      %p72 = por %p70, %p71
      %p74 = scmp.ne.s32.totalorder %s59, %s73
      %p75 = scmp.eq.s32.totalorder %s28, 0
      %p76 = por %p74, %p75
      %s78 = sadd.s32 %s77, 1
      %p81 = scmp.eq.s32.totalorder %s22, 1
      %p82 = scmp.ne.s32.totalorder %s77, %s79
      %p83 = scmp.eq.s32.totalorder %s22, 0
      %p84 = por %p82, %p83
      %p85 = scmp.ne.s32.totalorder %s77, %s79
      %p86 = scmp.eq.s32.totalorder %s27, 1
      %p87 = por %p85, %p86
      %p88 = scmp.ne.s32.totalorder %s79, %s80
      %p89 = scmp.eq.s32.totalorder %s27, 0
      %p90 = por %p88, %p89
      %p91 = scmp.ne.s32.totalorder %s79, %s80
      %p92 = scmp.eq.s32.totalorder %s28, 1
      %p93 = por %p91, %p92
      %p95 = scmp.ne.s32.totalorder %s80, %s94
      %p96 = scmp.eq.s32.totalorder %s28, 0
      %p97 = por %p95, %p96
      %s99 = sadd.s32 %s98, 1
      %p102 = scmp.eq.s32.totalorder %s22, 1
      %p103 = scmp.ne.s32.totalorder %s98, %s100
      %p104 = scmp.eq.s32.totalorder %s22, 0
      %p105 = por %p103, %p104
      %p106 = scmp.ne.s32.totalorder %s98, %s100
      %p107 = scmp.eq.s32.totalorder %s27, 1
      %p108 = por %p106, %p107
      %p109 = scmp.ne.s32.totalorder %s100, %s101
      %p110 = scmp.eq.s32.totalorder %s27, 0
      %p111 = por %p109, %p110
      %p112 = scmp.ne.s32.totalorder %s100, %s101
      %p113 = scmp.eq.s32.totalorder %s28, 1
      %p114 = por %p112, %p113
      %p116 = scmp.ne.s32.totalorder %s101, %s115
      %p117 = scmp.eq.s32.totalorder %s28, 0
      %p118 = por %p116, %p117
      %s120 = sadd.s32 %s119, 1
      %p123 = scmp.eq.s32.totalorder %s22, 1
      %p124 = scmp.ne.s32.totalorder %s119, %s121
      %p125 = scmp.eq.s32.totalorder %s22, 0
      %p126 = por %p124, %p125
      %p127 = scmp.ne.s32.totalorder %s119, %s121
      %p128 = scmp.eq.s32.totalorder %s27, 1
      %p129 = por %p127, %p128
      %p130 = scmp.ne.s32.totalorder %s121, %s122
      %p131 = scmp.eq.s32.totalorder %s27, 0
      %p132 = por %p130, %p131
      %p133 = scmp.ne.s32.totalorder %s121, %s122
      %p134 = scmp.eq.s32.totalorder %s28, 1
      %p135 = por %p133, %p134
      %p137 = scmp.ne.s32.totalorder %s122, %s136
      %p138 = scmp.eq.s32.totalorder %s28, 0
      %p139 = por %p137, %p138
      %s141 = sadd.s32 %s140, 1
      %p144 = scmp.eq.s32.totalorder %s22, 1
      %p145 = scmp.ne.s32.totalorder %s140, %s142
      %p146 = scmp.eq.s32.totalorder %s22, 0
      %p147 = por %p145, %p146
      %p148 = scmp.ne.s32.totalorder %s140, %s142
      %p149 = scmp.eq.s32.totalorder %s27, 1
      %p150 = por %p148, %p149
      %p151 = scmp.ne.s32.totalorder %s142, %s143
      %p152 = scmp.eq.s32.totalorder %s27, 0
      %p153 = por %p151, %p152
      %p154 = scmp.ne.s32.totalorder %s142, %s143
      %p155 = scmp.eq.s32.totalorder %s28, 1
      %p156 = por %p154, %p155
      %p158 = scmp.ne.s32.totalorder %s143, %s157
      %p159 = scmp.eq.s32.totalorder %s28, 0
      %p160 = por %p158, %p159
      %s162 = sadd.s32 %s161, 1
      %p165 = scmp.eq.s32.totalorder %s22, 1
      %p166 = scmp.ne.s32.totalorder %s161, %s163
      %p167 = scmp.eq.s32.totalorder %s22, 0
      %p168 = por %p166, %p167
      %p169 = scmp.ne.s32.totalorder %s161, %s163
      %p170 = scmp.eq.s32.totalorder %s27, 1
      %p171 = por %p169, %p170
      %p172 = scmp.ne.s32.totalorder %s163, %s164
      %p173 = scmp.eq.s32.totalorder %s27, 0
      %p174 = por %p172, %p173
      %p175 = scmp.ne.s32.totalorder %s163, %s164
      %p176 = scmp.eq.s32.totalorder %s28, 1
      %p177 = por %p175, %p176
      %p179 = scmp.ne.s32.totalorder %s164, %s178
      %p180 = scmp.eq.s32.totalorder %s28, 0
      %p181 = por %p179, %p180
      %s183 = sadd.s32 %s182, 1
      %p186 = scmp.eq.s32.totalorder %s22, 1
      %p187 = scmp.ne.s32.totalorder %s182, %s184
      %p188 = scmp.eq.s32.totalorder %s22, 0
      %p189 = por %p187, %p188
      %p190 = scmp.ne.s32.totalorder %s182, %s184
      %p191 = scmp.eq.s32.totalorder %s27, 1
      %p192 = por %p190, %p191
      %p193 = scmp.ne.s32.totalorder %s184, %s185
      %p194 = scmp.eq.s32.totalorder %s27, 0
      %p195 = por %p193, %p194
      %p196 = scmp.ne.s32.totalorder %s184, %s185
      %p197 = scmp.eq.s32.totalorder %s28, 1
      %p198 = por %p196, %p197
      %p200 = scmp.ne.s32.totalorder %s185, %s199
      %p201 = scmp.eq.s32.totalorder %s28, 0
      %p202 = por %p200, %p201
      %s204 = sadd.s32 %s203, 1
      %p207 = scmp.eq.s32.totalorder %s22, 1
      %p208 = scmp.ne.s32.totalorder %s203, %s205
      %p209 = scmp.eq.s32.totalorder %s22, 0
      %p210 = por %p208, %p209
      %p211 = scmp.ne.s32.totalorder %s203, %s205
      %p212 = scmp.eq.s32.totalorder %s27, 1
      %p213 = por %p211, %p212
      %p214 = scmp.ne.s32.totalorder %s205, %s206
      %p215 = scmp.eq.s32.totalorder %s27, 0
      %p216 = por %p214, %p215
      %p217 = scmp.ne.s32.totalorder %s205, %s206
      %p218 = scmp.eq.s32.totalorder %s28, 1
      %p219 = por %p217, %p218
      %p221 = scmp.ne.s32.totalorder %s206, %s220
      %p222 = scmp.eq.s32.totalorder %s28, 0
      %p223 = por %p221, %p222
      %s225 = sadd.s32 %s224, 1
      %p228 = scmp.eq.s32.totalorder %s22, 1
      %p229 = scmp.ne.s32.totalorder %s224, %s226
      %p230 = scmp.eq.s32.totalorder %s22, 0
      %p231 = por %p229, %p230
      %p232 = scmp.ne.s32.totalorder %s224, %s226
      %p233 = scmp.eq.s32.totalorder %s27, 1
      %p234 = por %p232, %p233
      %p235 = scmp.ne.s32.totalorder %s226, %s227
      %p236 = scmp.eq.s32.totalorder %s27, 0
      %p237 = por %p235, %p236
      %p238 = scmp.ne.s32.totalorder %s226, %s227
      %p239 = scmp.eq.s32.totalorder %s28, 1
      %p240 = por %p238, %p239
      %p242 = scmp.ne.s32.totalorder %s227, %s241
      %p243 = scmp.eq.s32.totalorder %s28, 0
      %p244 = por %p242, %p243
      %s246 = sadd.s32 %s245, 1
      %p249 = scmp.eq.s32.totalorder %s22, 1
      %p250 = scmp.ne.s32.totalorder %s245, %s247
      %p251 = scmp.eq.s32.totalorder %s22, 0
      %p252 = por %p250, %p251
      %p253 = scmp.ne.s32.totalorder %s245, %s247
      %p254 = scmp.eq.s32.totalorder %s27, 1
      %p255 = por %p253, %p254
      %p256 = scmp.ne.s32.totalorder %s247, %s248
      %p257 = scmp.eq.s32.totalorder %s27, 0
      %p258 = por %p256, %p257
      %p259 = scmp.ne.s32.totalorder %s247, %s248
      %p260 = scmp.eq.s32.totalorder %s28, 1
      %p261 = por %p259, %p260
      %p263 = scmp.ne.s32.totalorder %s248, %s262
      %p264 = scmp.eq.s32.totalorder %s28, 0
      %p265 = por %p263, %p264
      %s267 = sadd.s32 %s266, 1
      %p270 = scmp.eq.s32.totalorder %s22, 1
      %p271 = scmp.ne.s32.totalorder %s266, %s268
      %p272 = scmp.eq.s32.totalorder %s22, 0
      %p273 = por %p271, %p272
      %p274 = scmp.ne.s32.totalorder %s266, %s268
      %p275 = scmp.eq.s32.totalorder %s27, 1
      %p276 = por %p274, %p275
      %p277 = scmp.ne.s32.totalorder %s268, %s269
      %p278 = scmp.eq.s32.totalorder %s27, 0
      %p279 = por %p277, %p278
      %p280 = scmp.ne.s32.totalorder %s268, %s269
      %p281 = scmp.eq.s32.totalorder %s28, 1
      %p282 = por %p280, %p281
      %p284 = scmp.ne.s32.totalorder %s269, %s283
      %p285 = scmp.eq.s32.totalorder %s28, 0
      %p286 = por %p284, %p285
      %s288 = sadd.s32 %s287, 1
      %p291 = scmp.eq.s32.totalorder %s22, 1
      %p292 = scmp.ne.s32.totalorder %s287, %s289
      %p293 = scmp.eq.s32.totalorder %s22, 0
      %p294 = por %p292, %p293
      %p295 = scmp.ne.s32.totalorder %s287, %s289
      %p296 = scmp.eq.s32.totalorder %s27, 1
      %p297 = por %p295, %p296
      %p298 = scmp.ne.s32.totalorder %s289, %s290
      %p299 = scmp.eq.s32.totalorder %s27, 0
      %p300 = por %p298, %p299
      %p301 = scmp.ne.s32.totalorder %s289, %s290
      %p302 = scmp.eq.s32.totalorder %s28, 1
      %p303 = por %p301, %p302
      %p305 = scmp.ne.s32.totalorder %s290, %s304
      %p306 = scmp.eq.s32.totalorder %s28, 0
      %p307 = por %p305, %p306
      %s308 = ssub.s32 %s22, %s29
      %p309 = scmp.eq.s32.totalorder %s308, 0
      %s311 = sadd.s32 %s310, 1
      %s312 = scalar_select %p309, %s310, %s311
      %p315 = pneg %p309
      %p316 = scmp.eq.s32.totalorder %s22, 1
      %p317 = por %p315, %p316
      %p318 = scmp.ne.s32.totalorder %s310, %s313
      %p319 = scmp.eq.s32.totalorder %s22, 0
      %p320 = por %p318, %p319
      %p321 = scmp.ne.s32.totalorder %s310, %s313
      %p322 = scmp.eq.s32.totalorder %s27, 1
      %p323 = por %p321, %p322
      %p324 = scmp.ne.s32.totalorder %s313, %s314
      %p325 = scmp.eq.s32.totalorder %s27, 0
      %p326 = por %p324, %p325
      %p327 = scmp.ne.s32.totalorder %s313, %s314
      %p328 = scmp.eq.s32.totalorder %s28, 1
      %p329 = por %p327, %p328
      %p331 = scmp.ne.s32.totalorder %s314, %s330
      %p332 = scmp.eq.s32.totalorder %s28, 0
      %p333 = por %p331, %p332
      %p334 = scmp.le.s32.totalorder 1, %s22
      %p335 = scmp.lt.s32.totalorder %s22, 3
      %p336 = pnand %p334, %p335
      %p337 = pneg %p336
      // Predicated region
      $region9: #{tpu_custom_call.1} parent=5 // pred_check
        _
      $region10: #{tpu_custom_call.1} parent=5 // pred_check_branch
        %339 = sbr.rel (%p336) target = $region12
      $region11: #{tpu_custom_call.1} parent=5 // pred_region
        %s340 = ssub.s32 %s22, 1
        // Predicated region
        $region13: #{tpu_custom_call.1} parent=11 // pred_check
          %p341 = pneg %p69
        $region14: #{tpu_custom_call.1} parent=11 // pred_check_branch
          %343 = sbr.rel (%p341) target = $region16
        $region15: #{tpu_custom_call.1} parent=11 // pred_region
          _
        $region16: #{tpu_custom_call.1} parent=11 // pred_fallthru
          _
        // Predicated region
        $region17: #{tpu_custom_call.1} parent=11 // pred_check
          %p344 = pneg %p90
        $region18: #{tpu_custom_call.1} parent=11 // pred_check_branch
          %346 = sbr.rel (%p344) target = $region20
        $region19: #{tpu_custom_call.1} parent=11 // pred_region
          _
        $region20: #{tpu_custom_call.1} parent=11 // pred_fallthru
          _
        // Predicated region
        $region21: #{tpu_custom_call.1} parent=11 // pred_check
          %p347 = pneg %p111
        $region22: #{tpu_custom_call.1} parent=11 // pred_check_branch
          %349 = sbr.rel (%p347) target = $region24
        $region23: #{tpu_custom_call.1} parent=11 // pred_region
          _
        $region24: #{tpu_custom_call.1} parent=11 // pred_fallthru
          _
        // Predicated region
        $region25: #{tpu_custom_call.1} parent=11 // pred_check
          %p350 = pneg %p132
        $region26: #{tpu_custom_call.1} parent=11 // pred_check_branch
          %352 = sbr.rel (%p350) target = $region28
        $region27: #{tpu_custom_call.1} parent=11 // pred_region
          _
        $region28: #{tpu_custom_call.1} parent=11 // pred_fallthru
          _
        // Predicated region
        $region29: #{tpu_custom_call.1} parent=11 // pred_check
          %p353 = pneg %p153
        $region30: #{tpu_custom_call.1} parent=11 // pred_check_branch
          %355 = sbr.rel (%p353) target = $region32
        $region31: #{tpu_custom_call.1} parent=11 // pred_region
          _
        $region32: #{tpu_custom_call.1} parent=11 // pred_fallthru
          _
        // Predicated region
        $region33: #{tpu_custom_call.1} parent=11 // pred_check
          %p356 = pneg %p174
        $region34: #{tpu_custom_call.1} parent=11 // pred_check_branch
          %358 = sbr.rel (%p356) target = $region36
        $region35: #{tpu_custom_call.1} parent=11 // pred_region
          _
        $region36: #{tpu_custom_call.1} parent=11 // pred_fallthru
          _
        // Predicated region
        $region37: #{tpu_custom_call.1} parent=11 // pred_check
          %p359 = pneg %p195
        $region38: #{tpu_custom_call.1} parent=11 // pred_check_branch
          %361 = sbr.rel (%p359) target = $region40
        $region39: #{tpu_custom_call.1} parent=11 // pred_region
          _
        $region40: #{tpu_custom_call.1} parent=11 // pred_fallthru
          _
        // Predicated region
        $region41: #{tpu_custom_call.1} parent=11 // pred_check
          %p362 = pneg %p216
        $region42: #{tpu_custom_call.1} parent=11 // pred_check_branch
          %364 = sbr.rel (%p362) target = $region44
        $region43: #{tpu_custom_call.1} parent=11 // pred_region
          _
        $region44: #{tpu_custom_call.1} parent=11 // pred_fallthru
          _
        // Predicated region
        $region45: #{tpu_custom_call.1} parent=11 // pred_check
          %p365 = pneg %p237
        $region46: #{tpu_custom_call.1} parent=11 // pred_check_branch
          %367 = sbr.rel (%p365) target = $region48
        $region47: #{tpu_custom_call.1} parent=11 // pred_region
          _
        $region48: #{tpu_custom_call.1} parent=11 // pred_fallthru
          _
        // Predicated region
        $region49: #{tpu_custom_call.1} parent=11 // pred_check
          %p368 = pneg %p258
        $region50: #{tpu_custom_call.1} parent=11 // pred_check_branch
          %370 = sbr.rel (%p368) target = $region52
        $region51: #{tpu_custom_call.1} parent=11 // pred_region
          _
        $region52: #{tpu_custom_call.1} parent=11 // pred_fallthru
          _
        // Predicated region
        $region53: #{tpu_custom_call.1} parent=11 // pred_check
          %p371 = pneg %p279
        $region54: #{tpu_custom_call.1} parent=11 // pred_check_branch
          %373 = sbr.rel (%p371) target = $region56
        $region55: #{tpu_custom_call.1} parent=11 // pred_region
          _
        $region56: #{tpu_custom_call.1} parent=11 // pred_fallthru
          _
        // Predicated region
        $region57: #{tpu_custom_call.1} parent=11 // pred_check
          %p374 = pneg %p300
        $region58: #{tpu_custom_call.1} parent=11 // pred_check_branch
          %376 = sbr.rel (%p374) target = $region60
        $region59: #{tpu_custom_call.1} parent=11 // pred_region
          _
        $region60: #{tpu_custom_call.1} parent=11 // pred_fallthru
          _
      $region12: #{tpu_custom_call.1} parent=5 // pred_fallthru
        _
      %p377 = scmp.lt.s32.totalorder %s22, 2
      // Predicated region
      $region61: #{tpu_custom_call.1} parent=5 // pred_check
        %p378 = pneg %p377
      $region62: #{tpu_custom_call.1} parent=5 // pred_check_branch
        %380 = sbr.rel (%p378) target = $region64
      $region63: #{tpu_custom_call.1} parent=5 // pred_region
        // Predicated region
        $region65: #{tpu_custom_call.1} parent=63 // pred_check
          %p381 = pneg %p42
        $region66: #{tpu_custom_call.1} parent=63 // pred_check_branch
          %383 = sbr.rel (%p381) target = $region68
        $region67: #{tpu_custom_call.1} parent=63 // pred_region
          %p384 = scmp.lt.s32.totalorder %s22, 1
          %s385 = scalar_select %p384, %s22, 1
          %s386 = smul.addr %s385, 8
          %s387 = scalar_lea.vmem %s0, %s386
        $region68: #{tpu_custom_call.1} parent=63 // pred_fallthru
          _
      $region64: #{tpu_custom_call.1} parent=5 // pred_fallthru
        _
      %p388 = scmp.le.s32.totalorder 1, %s22
      %p389 = scmp.lt.s32.totalorder %s22, 3
      %p390 = pnand %p388, %p389
      %p391 = pneg %p390
      // Predicated region
      $region69: #{tpu_custom_call.1} parent=5 // pred_check
        _
      $region70: #{tpu_custom_call.1} parent=5 // pred_check_branch
        %393 = sbr.rel (%p390) target = $region72
      $region71: #{tpu_custom_call.1} parent=5 // pred_region
        %s394 = ssub.s32 %s22, 1
        %p395 = scmp.lt.s32.totalorder %s27, 1
        %s396 = scalar_select %p395, %s27, 1
        %s397 = smul.addr %s396, 8
        %s398 = scalar_lea.vmem %s0, %s397
        %p399 = pneg %p48
        %p400 = pneg %p45
        %p401 = pneg %p69
        %p402 = pneg %p66
        %p403 = pneg %p90
        %p404 = pneg %p87
        %p405 = pneg %p111
        %p406 = pneg %p108
        %p407 = pneg %p132
        %p408 = pneg %p129
        %p409 = pneg %p153
        %p410 = pneg %p150
        %p411 = pneg %p174
        %p412 = pneg %p171
        %p413 = pneg %p195
        %p414 = pneg %p192
        %p415 = pneg %p216
        %p416 = pneg %p213
        %p417 = pneg %p237
        %p418 = pneg %p234
        %p419 = pneg %p258
        %p420 = pneg %p255
        %p421 = pneg %p279
        %p422 = pneg %p276
        %p423 = pneg %p300
        %p424 = pneg %p297
        %p425 = pneg %p326
        %p426 = pneg %p323
        %s427 = sand.u32 %s313, 1
        %s428 = scalar_lea.sflag [#allocation4], %s427
        %s429 = sand.u32 %s313, 1
        %s430 = smul.addr %s429, 8
        %s431 = scalar_lea.vmem [#allocation3], %s430
        %p432 = scmp.lt.s32.totalorder %s27, 1
        %s433 = scalar_select %p432, %s27, 1
        %s434 = smul.addr %s433, 8
        %s435 = scalar_lea.vmem %s0, %s434
        %v436 = vld [vmem:[%s435] sm:$0xff]
        %v437 = vld [vmem:[%s1] sm:$0x1]
        %v438 = vld [vmem:[%s2] sm:$0x1]
        %vm439 = vcmask 261120
        %v440 = vsel %vm439, %v436, 0.0
        %441 = vadd.xlane.f32.xlu0 %v440
        %v442 = vpop.xlane.xlu0 %441
        %v443 = vrcp.pop 32.0
        %v444 = vmul.f32 %v442, %v443
        %v445 = vsub.f32 %v436, %v444
        %v446 = vmul.f32 %v445, %v445
        %v447 = vsel %vm439, %v446, 0.0
        %448 = vadd.xlane.f32.xlu0 %v447
        %v449 = vpop.xlane.xlu0 %448
        %v450 = vmul.f32 %v449, %v443
        %v451 = vadd.f32 %v450, 1e-05
        %v452 = vrsqrt.pop %v451
        %v453 = vmul.f32 %v445, %v452
        %v455 = vlaneseq
        %v456 = vshrl.u32 %v455, 7
        %v457 = vsub.s32 0, %v456
        %v458 = vrot.slane %v437, %v457
        %v460 = vmul.f32 %v453, %v458
        %v462 = vlaneseq
        %v463 = vshrl.u32 %v462, 7
        %v464 = vsub.s32 0, %v463
        %v465 = vrot.slane %v438, %v464
        %v467 = vadd.f32 %v460, %v465
        %v468 = vld [vmem:[%s3] sm:$0xff]
        %v469 = vld [vmem:[%s3 + $0x8] sm:$0xff]
        %v470 = vld [vmem:[%s3 + $0x10] sm:$0xff]
        %v471 = vld [vmem:[%s3 + $0x18] sm:$0xff]
        %v472 = vld [vmem:[%s4] sm:$0x1]
        %v474 = vlaneseq
        %v475 = vshrl.u32 %v474, 7
        %v476 = vsub.s32 0, %v475
        %v477 = vrot.slane %v472, %v476
        %v480 = vsel %vm439, %v467, 0
        %482 = vmatprep.subr.mxu0 0.0
        %483 = vmatpush1.msra.mxu0 %v468
        %484 = vmatprep.subr.mxu0 0.0
        %485 = vmatpush1.msra.mxu0 %v469
        %486 = vmatprep.subr.mxu0 0.0
        %487 = vmatpush1.msra.mxu0 %v470
        %488 = vmatprep.subr.mxu0 0.0
        %489 = vmatpush1.msra.mxu0 %v471
        %490 = vmatprep.subr.mxu0 0.0
        %491 = vmatpush1.msra.mxu0 0.0
        %492 = vmatprep.subr.mxu0 0.0
        %493 = vmatpush1.msra.mxu0 0.0
        %494 = vmatprep.subr.mxu0 0.0
        %495 = vmatpush1.msra.mxu0 0.0
        %496 = vmatprep.subr.mxu0 0.0
        %497 = vmatpush1.msra.mxu0 0.0
        %498 = vmatprep.subr.mxu0 0.0
        %499 = vmatpush1.msra.mxu0 0.0
        %500 = vmatprep.subr.mxu0 0.0
        %501 = vmatpush1.msra.mxu0 0.0
        %502 = vmatprep.subr.mxu0 0.0
        %503 = vmatpush1.msra.mxu0 0.0
        %504 = vmatprep.subr.mxu0 0.0
        %505 = vmatpush1.msra.mxu0 0.0
        %506 = vmatprep.subr.mxu0 0.0
        %507 = vmatpush1.msra.mxu0 0.0
        %508 = vmatprep.subr.mxu0 0.0
        %509 = vmatpush1.msra.mxu0 0.0
        %510 = vmatprep.subr.mxu0 0.0
        %511 = vmatpush1.msra.mxu0 0.0
        %512 = vmatprep.subr.mxu0 0.0
        %513 = vmatpush1.msra.mxu0 0.0
        %514 = vmatprep.subr.mxu0 0.0
        %515 = vmatpush1.msra.mxu0 0.0
        %516 = vmatprep.subr.mxu0 0.0
        %517 = vmatpush1.msra.mxu0 0.0
        %518 = vmatprep.subr.mxu0 0.0
        %519 = vmatpush1.msra.mxu0 0.0
        %520 = vmatprep.subr.mxu0 0.0
        %521 = vmatpush1.msra.mxu0 0.0
        %522 = vmatprep.subr.mxu0 0.0
        %523 = vmatpush1.msra.mxu0 0.0
        %524 = vmatprep.subr.mxu0 0.0
        %525 = vmatpush1.msra.mxu0 0.0
        %526 = vmatprep.subr.mxu0 0.0
        %527 = vmatpush1.msra.mxu0 0.0
        %528 = vmatprep.subr.mxu0 0.0
        %529 = vmatpush1.msra.mxu0 0.0
        %530 = vmatprep.subr.mxu0 0.0
        %531 = vmatpush1.msra.mxu0 0.0
        %532 = vmatprep.subr.mxu0 0.0
        %533 = vmatpush1.msra.mxu0 0.0
        %534 = vmatprep.subr.mxu0 0.0
        %535 = vmatpush1.msra.mxu0 0.0
        %536 = vmatprep.subr.mxu0 0.0
        %537 = vmatpush1.msra.mxu0 0.0
        %538 = vmatprep.subr.mxu0 0.0
        %539 = vmatpush1.msra.mxu0 0.0
        %540 = vmatprep.subr.mxu0 0.0
        %541 = vmatpush1.msra.mxu0 0.0
        %542 = vmatprep.subr.mxu0 0.0
        %543 = vmatpush1.msra.mxu0 0.0
        %544 = vmatprep.subr.mxu0 0.0
        %545 = vmatpush1.msra.mxu0 0.0
        %546 = vmatprep.mubr.f32.mxu0 0.0
        %547 = vmatmul.mubr.f32.gmra.mrb[0].mxu0 %v480
        %v548 = vpop.f32.mrb[0].mxu0
        %v549 = vadd.f32 %v477, %v548
        %v550 = vpop.f32.mrb[0].mxu0
        %551 = vdwg.mxu0
        %v552 = vmul.f32 %v549, 0.35355338
        %v553 = vlaneseq
        %v554 = vshrl.u32 %v553, 7
        %v555 = vlaneseq
        %v556 = vand.u32 %v555, 127
        %vm557 = vcmp.ge.s32.totalorder %v554, %v556
        %559 = vrot.lane.b32.xlu0 %v549, 96
        %v560 = vpop.permute.xlu0 %559
        %vm561 = vcmask 64512
        %v563 = vsel %vm561, %v552, 0
        %v565 = vsel %vm561, %v560, 0
        %567 = vmatprep.subr.mxu0 0.0
        %568 = vmatpush1.xpose.msra.mxu0 %v565
        %569 = vmatprep.subr.mxu0 0.0
        %570 = vmatpush1.xpose.msra.mxu0 0.0
        %571 = vmatprep.subr.mxu0 0.0
        %572 = vmatpush1.xpose.msra.mxu0 0.0
        %573 = vmatprep.subr.mxu0 0.0
        %574 = vmatpush1.xpose.msra.mxu0 0.0
        %575 = vmatprep.subr.mxu0 0.0
        %576 = vmatpush1.xpose.msra.mxu0 0.0
        %577 = vmatprep.subr.mxu0 0.0
        %578 = vmatpush1.xpose.msra.mxu0 0.0
        %579 = vmatprep.subr.mxu0 0.0
        %580 = vmatpush1.xpose.msra.mxu0 0.0
        %581 = vmatprep.subr.mxu0 0.0
        %582 = vmatpush1.xpose.msra.mxu0 0.0
        %583 = vmatprep.subr.mxu0 0.0
        %584 = vmatpush1.xpose.msra.mxu0 0.0
        %585 = vmatprep.subr.mxu0 0.0
        %586 = vmatpush1.xpose.msra.mxu0 0.0
        %587 = vmatprep.subr.mxu0 0.0
        %588 = vmatpush1.xpose.msra.mxu0 0.0
        %589 = vmatprep.subr.mxu0 0.0
        %590 = vmatpush1.xpose.msra.mxu0 0.0
        %591 = vmatprep.subr.mxu0 0.0
        %592 = vmatpush1.xpose.msra.mxu0 0.0
        %593 = vmatprep.subr.mxu0 0.0
        %594 = vmatpush1.xpose.msra.mxu0 0.0
        %595 = vmatprep.subr.mxu0 0.0
        %596 = vmatpush1.xpose.msra.mxu0 0.0
        %597 = vmatprep.subr.mxu0 0.0
        %598 = vmatpush1.xpose.msra.mxu0 0.0
        %599 = vmatprep.subr.mxu0 0.0
        %600 = vmatpush1.xpose.msra.mxu0 0.0
        %601 = vmatprep.subr.mxu0 0.0
        %602 = vmatpush1.xpose.msra.mxu0 0.0
        %603 = vmatprep.subr.mxu0 0.0
        %604 = vmatpush1.xpose.msra.mxu0 0.0
        %605 = vmatprep.subr.mxu0 0.0
        %606 = vmatpush1.xpose.msra.mxu0 0.0
        %607 = vmatprep.subr.mxu0 0.0
        %608 = vmatpush1.xpose.msra.mxu0 0.0
        %609 = vmatprep.subr.mxu0 0.0
        %610 = vmatpush1.xpose.msra.mxu0 0.0
        %611 = vmatprep.subr.mxu0 0.0
        %612 = vmatpush1.xpose.msra.mxu0 0.0
        %613 = vmatprep.subr.mxu0 0.0
        %614 = vmatpush1.xpose.msra.mxu0 0.0
        %615 = vmatprep.subr.mxu0 0.0
        %616 = vmatpush1.xpose.msra.mxu0 0.0
        %617 = vmatprep.subr.mxu0 0.0
        %618 = vmatpush1.xpose.msra.mxu0 0.0
        %619 = vmatprep.subr.mxu0 0.0
        %620 = vmatpush1.xpose.msra.mxu0 0.0
        %621 = vmatprep.subr.mxu0 0.0
        %622 = vmatpush1.xpose.msra.mxu0 0.0
        %623 = vmatprep.subr.mxu0 0.0
        %624 = vmatpush1.xpose.msra.mxu0 0.0
        %625 = vmatprep.subr.mxu0 0.0
        %626 = vmatpush1.xpose.msra.mxu0 0.0
        %627 = vmatprep.subr.mxu0 0.0
        %628 = vmatpush1.xpose.msra.mxu0 0.0
        %629 = vmatprep.subr.mxu0 0.0
        %630 = vmatpush1.xpose.msra.mxu0 0.0
        %631 = vmatprep.mubr.f32.mxu0 0.0
        %632 = vmatmul.mubr.f32.gmra.mrb[0].mxu0 %v563
        %v633 = vpop.f32.mrb[0].mxu0
        %v634 = vadd.f32 0.0, %v633
        %v635 = vpop.f32.mrb[0].mxu0
        %636 = vdwg.mxu0
        %v637 = vsel %vm557, %v634, -1e+30
        %v638 = vsel %vm561, %v637, -inf
        %639 = vmax.xlane.f32.xlu0 %v638
        %v640 = vpop.xlane.xlu0 %639
        %v641 = vsub.f32 %v637, %v640
        %v642 = vmul.f32 %v641, 1.442695
        %v643 = vpow.pop %v642
        %v644 = vsel %vm561, %v643, 0.0
        %645 = vadd.xlane.f32.xlu0 %v644
        %v646 = vpop.xlane.xlu0 %645
        %v647 = vrcp.pop %v646
        %648 = vrot.lane.b32.xlu0 %v549, 64
        %v649 = vpop.permute.xlu0 %648
        %v652 = vsel %vm561, %v643, 0
        %654 = vmatprep.subr.mxu0 0.0
        %655 = vmatpush1.msra.mxu0 %v649
        %656 = vmatprep.subr.mxu0 0.0
        %657 = vmatpush1.msra.mxu0 0.0
        %658 = vmatprep.subr.mxu0 0.0
        %659 = vmatpush1.msra.mxu0 0.0
        %660 = vmatprep.subr.mxu0 0.0
        %661 = vmatpush1.msra.mxu0 0.0
        %662 = vmatprep.subr.mxu0 0.0
        %663 = vmatpush1.msra.mxu0 0.0
        %664 = vmatprep.subr.mxu0 0.0
        %665 = vmatpush1.msra.mxu0 0.0
        %666 = vmatprep.subr.mxu0 0.0
        %667 = vmatpush1.msra.mxu0 0.0
        %668 = vmatprep.subr.mxu0 0.0
        %669 = vmatpush1.msra.mxu0 0.0
        %670 = vmatprep.subr.mxu0 0.0
        %671 = vmatpush1.msra.mxu0 0.0
        %672 = vmatprep.subr.mxu0 0.0
        %673 = vmatpush1.msra.mxu0 0.0
        %674 = vmatprep.subr.mxu0 0.0
        %675 = vmatpush1.msra.mxu0 0.0
        %676 = vmatprep.subr.mxu0 0.0
        %677 = vmatpush1.msra.mxu0 0.0
        %678 = vmatprep.subr.mxu0 0.0
        %679 = vmatpush1.msra.mxu0 0.0
        %680 = vmatprep.subr.mxu0 0.0
        %681 = vmatpush1.msra.mxu0 0.0
        %682 = vmatprep.subr.mxu0 0.0
        %683 = vmatpush1.msra.mxu0 0.0
        %684 = vmatprep.subr.mxu0 0.0
        %685 = vmatpush1.msra.mxu0 0.0
        %686 = vmatprep.subr.mxu0 0.0
        %687 = vmatpush1.msra.mxu0 0.0
        %688 = vmatprep.subr.mxu0 0.0
        %689 = vmatpush1.msra.mxu0 0.0
        %690 = vmatprep.subr.mxu0 0.0
        %691 = vmatpush1.msra.mxu0 0.0
        %692 = vmatprep.subr.mxu0 0.0
        %693 = vmatpush1.msra.mxu0 0.0
        %694 = vmatprep.subr.mxu0 0.0
        %695 = vmatpush1.msra.mxu0 0.0
        %696 = vmatprep.subr.mxu0 0.0
        %697 = vmatpush1.msra.mxu0 0.0
        %698 = vmatprep.subr.mxu0 0.0
        %699 = vmatpush1.msra.mxu0 0.0
        %700 = vmatprep.subr.mxu0 0.0
        %701 = vmatpush1.msra.mxu0 0.0
        %702 = vmatprep.subr.mxu0 0.0
        %703 = vmatpush1.msra.mxu0 0.0
        %704 = vmatprep.subr.mxu0 0.0
        %705 = vmatpush1.msra.mxu0 0.0
        %706 = vmatprep.subr.mxu0 0.0
        %707 = vmatpush1.msra.mxu0 0.0
        %708 = vmatprep.subr.mxu0 0.0
        %709 = vmatpush1.msra.mxu0 0.0
        %710 = vmatprep.subr.mxu0 0.0
        %711 = vmatpush1.msra.mxu0 0.0
        %712 = vmatprep.subr.mxu0 0.0
        %713 = vmatpush1.msra.mxu0 0.0
        %714 = vmatprep.subr.mxu0 0.0
        %715 = vmatpush1.msra.mxu0 0.0
        %716 = vmatprep.subr.mxu0 0.0
        %717 = vmatpush1.msra.mxu0 0.0
        %718 = vmatprep.mubr.f32.mxu0 0.0
        %719 = vmatmul.mubr.f32.gmra.mrb[0].mxu0 %v652
        %v720 = vpop.f32.mrb[0].mxu0
        %v721 = vadd.f32 0.0, %v720
        %v722 = vpop.f32.mrb[0].mxu0
        %723 = vdwg.mxu0
        %v724 = vmul.f32 %v721, %v647
        %725 = vst.msk [vmem:[#allocation2] sm:$0xff] %vm561, %v724
        %726 = vrot.lane.b32.xlu0 %v552, 120
        %v727 = vpop.permute.xlu0 %726
        %728 = vrot.lane.b32.xlu0 %v549, 88
        %v729 = vpop.permute.xlu0 %728
        %v730 = vsel %vm561, %v727, 0
        %v732 = vsel %vm561, %v729, 0
        %734 = vmatprep.subr.mxu0 0.0
        %735 = vmatpush1.xpose.msra.mxu0 %v732
        %736 = vmatprep.subr.mxu0 0.0
        %737 = vmatpush1.xpose.msra.mxu0 0.0
        %738 = vmatprep.subr.mxu0 0.0
        %739 = vmatpush1.xpose.msra.mxu0 0.0
        %740 = vmatprep.subr.mxu0 0.0
        %741 = vmatpush1.xpose.msra.mxu0 0.0
        %742 = vmatprep.subr.mxu0 0.0
        %743 = vmatpush1.xpose.msra.mxu0 0.0
        %744 = vmatprep.subr.mxu0 0.0
        %745 = vmatpush1.xpose.msra.mxu0 0.0
        %746 = vmatprep.subr.mxu0 0.0
        %747 = vmatpush1.xpose.msra.mxu0 0.0
        %748 = vmatprep.subr.mxu0 0.0
        %749 = vmatpush1.xpose.msra.mxu0 0.0
        %750 = vmatprep.subr.mxu0 0.0
        %751 = vmatpush1.xpose.msra.mxu0 0.0
        %752 = vmatprep.subr.mxu0 0.0
        %753 = vmatpush1.xpose.msra.mxu0 0.0
        %754 = vmatprep.subr.mxu0 0.0
        %755 = vmatpush1.xpose.msra.mxu0 0.0
        %756 = vmatprep.subr.mxu0 0.0
        %757 = vmatpush1.xpose.msra.mxu0 0.0
        %758 = vmatprep.subr.mxu0 0.0
        %759 = vmatpush1.xpose.msra.mxu0 0.0
        %760 = vmatprep.subr.mxu0 0.0
        %761 = vmatpush1.xpose.msra.mxu0 0.0
        %762 = vmatprep.subr.mxu0 0.0
        %763 = vmatpush1.xpose.msra.mxu0 0.0
        %764 = vmatprep.subr.mxu0 0.0
        %765 = vmatpush1.xpose.msra.mxu0 0.0
        %766 = vmatprep.subr.mxu0 0.0
        %767 = vmatpush1.xpose.msra.mxu0 0.0
        %768 = vmatprep.subr.mxu0 0.0
        %769 = vmatpush1.xpose.msra.mxu0 0.0
        %770 = vmatprep.subr.mxu0 0.0
        %771 = vmatpush1.xpose.msra.mxu0 0.0
        %772 = vmatprep.subr.mxu0 0.0
        %773 = vmatpush1.xpose.msra.mxu0 0.0
        %774 = vmatprep.subr.mxu0 0.0
        %775 = vmatpush1.xpose.msra.mxu0 0.0
        %776 = vmatprep.subr.mxu0 0.0
        %777 = vmatpush1.xpose.msra.mxu0 0.0
        %778 = vmatprep.subr.mxu0 0.0
        %779 = vmatpush1.xpose.msra.mxu0 0.0
        %780 = vmatprep.subr.mxu0 0.0
        %781 = vmatpush1.xpose.msra.mxu0 0.0
        %782 = vmatprep.subr.mxu0 0.0
        %783 = vmatpush1.xpose.msra.mxu0 0.0
        %784 = vmatprep.subr.mxu0 0.0
        %785 = vmatpush1.xpose.msra.mxu0 0.0
        %786 = vmatprep.subr.mxu0 0.0
        %787 = vmatpush1.xpose.msra.mxu0 0.0
        %788 = vmatprep.subr.mxu0 0.0
        %789 = vmatpush1.xpose.msra.mxu0 0.0
        %790 = vmatprep.subr.mxu0 0.0
        %791 = vmatpush1.xpose.msra.mxu0 0.0
        %792 = vmatprep.subr.mxu0 0.0
        %793 = vmatpush1.xpose.msra.mxu0 0.0
        %794 = vmatprep.subr.mxu0 0.0
        %795 = vmatpush1.xpose.msra.mxu0 0.0
        %796 = vmatprep.subr.mxu0 0.0
        %797 = vmatpush1.xpose.msra.mxu0 0.0
        %798 = vmatprep.mubr.f32.mxu0 0.0
        %799 = vmatmul.mubr.f32.gmra.mrb[0].mxu0 %v730
        %v800 = vpop.f32.mrb[0].mxu0
        %v801 = vadd.f32 0.0, %v800
        %v802 = vpop.f32.mrb[0].mxu0
        %803 = vdwg.mxu0
        %v804 = vsel %vm557, %v801, -1e+30
        %v805 = vsel %vm561, %v804, -inf
        %806 = vmax.xlane.f32.xlu0 %v805
        %v807 = vpop.xlane.xlu0 %806
        %v808 = vsub.f32 %v804, %v807
        %v809 = vmul.f32 %v808, 1.442695
        %v810 = vpow.pop %v809
        %v811 = vsel %vm561, %v810, 0.0
        %812 = vadd.xlane.f32.xlu0 %v811
        %v813 = vpop.xlane.xlu0 %812
        %v814 = vrcp.pop %v813
        %815 = vrot.lane.b32.xlu0 %v549, 56
        %v816 = vpop.permute.xlu0 %815
        %v819 = vsel %vm561, %v810, 0
        %821 = vmatprep.subr.mxu0 0.0
        %822 = vmatpush1.msra.mxu0 %v816
        %823 = vmatprep.subr.mxu0 0.0
        %824 = vmatpush1.msra.mxu0 0.0
        %825 = vmatprep.subr.mxu0 0.0
        %826 = vmatpush1.msra.mxu0 0.0
        %827 = vmatprep.subr.mxu0 0.0
        %828 = vmatpush1.msra.mxu0 0.0
        %829 = vmatprep.subr.mxu0 0.0
        %830 = vmatpush1.msra.mxu0 0.0
        %831 = vmatprep.subr.mxu0 0.0
        %832 = vmatpush1.msra.mxu0 0.0
        %833 = vmatprep.subr.mxu0 0.0
        %834 = vmatpush1.msra.mxu0 0.0
        %835 = vmatprep.subr.mxu0 0.0
        %836 = vmatpush1.msra.mxu0 0.0
        %837 = vmatprep.subr.mxu0 0.0
        %838 = vmatpush1.msra.mxu0 0.0
        %839 = vmatprep.subr.mxu0 0.0
        %840 = vmatpush1.msra.mxu0 0.0
        %841 = vmatprep.subr.mxu0 0.0
        %842 = vmatpush1.msra.mxu0 0.0
        %843 = vmatprep.subr.mxu0 0.0
        %844 = vmatpush1.msra.mxu0 0.0
        %845 = vmatprep.subr.mxu0 0.0
        %846 = vmatpush1.msra.mxu0 0.0
        %847 = vmatprep.subr.mxu0 0.0
        %848 = vmatpush1.msra.mxu0 0.0
        %849 = vmatprep.subr.mxu0 0.0
        %850 = vmatpush1.msra.mxu0 0.0
        %851 = vmatprep.subr.mxu0 0.0
        %852 = vmatpush1.msra.mxu0 0.0
        %853 = vmatprep.subr.mxu0 0.0
        %854 = vmatpush1.msra.mxu0 0.0
        %855 = vmatprep.subr.mxu0 0.0
        %856 = vmatpush1.msra.mxu0 0.0
        %857 = vmatprep.subr.mxu0 0.0
        %858 = vmatpush1.msra.mxu0 0.0
        %859 = vmatprep.subr.mxu0 0.0
        %860 = vmatpush1.msra.mxu0 0.0
        %861 = vmatprep.subr.mxu0 0.0
        %862 = vmatpush1.msra.mxu0 0.0
        %863 = vmatprep.subr.mxu0 0.0
        %864 = vmatpush1.msra.mxu0 0.0
        %865 = vmatprep.subr.mxu0 0.0
        %866 = vmatpush1.msra.mxu0 0.0
        %867 = vmatprep.subr.mxu0 0.0
        %868 = vmatpush1.msra.mxu0 0.0
        %869 = vmatprep.subr.mxu0 0.0
        %870 = vmatpush1.msra.mxu0 0.0
        %871 = vmatprep.subr.mxu0 0.0
        %872 = vmatpush1.msra.mxu0 0.0
        %873 = vmatprep.subr.mxu0 0.0
        %874 = vmatpush1.msra.mxu0 0.0
        %875 = vmatprep.subr.mxu0 0.0
        %876 = vmatpush1.msra.mxu0 0.0
        %877 = vmatprep.subr.mxu0 0.0
        %878 = vmatpush1.msra.mxu0 0.0
        %879 = vmatprep.subr.mxu0 0.0
        %880 = vmatpush1.msra.mxu0 0.0
        %881 = vmatprep.subr.mxu0 0.0
        %882 = vmatpush1.msra.mxu0 0.0
        %883 = vmatprep.subr.mxu0 0.0
        %884 = vmatpush1.msra.mxu0 0.0
        %885 = vmatprep.mubr.f32.mxu0 0.0
        %886 = vmatmul.mubr.f32.gmra.mrb[0].mxu0 %v819
        %v887 = vpop.f32.mrb[0].mxu0
        %v888 = vadd.f32 0.0, %v887
        %v889 = vpop.f32.mrb[0].mxu0
        %890 = vdwg.mxu0
        %v891 = vmul.f32 %v888, %v814
        %893 = vrot.lane.b32.xlu0 %v891, 8
        %v894 = vpop.permute.xlu0 %893
        %vm896 = vcmask 130112
        %897 = vst.msk [vmem:[#allocation2] sm:$0xff] %vm896, %v894
        %898 = vrot.lane.b32.xlu0 %v552, 112
        %v899 = vpop.permute.xlu0 %898
        %900 = vrot.lane.b32.xlu0 %v549, 80
        %v901 = vpop.permute.xlu0 %900
        %v902 = vsel %vm561, %v899, 0
        %v904 = vsel %vm561, %v901, 0
        %906 = vmatprep.subr.mxu0 0.0
        %907 = vmatpush1.xpose.msra.mxu0 %v904
        %908 = vmatprep.subr.mxu0 0.0
        %909 = vmatpush1.xpose.msra.mxu0 0.0
        %910 = vmatprep.subr.mxu0 0.0
        %911 = vmatpush1.xpose.msra.mxu0 0.0
        %912 = vmatprep.subr.mxu0 0.0
        %913 = vmatpush1.xpose.msra.mxu0 0.0
        %914 = vmatprep.subr.mxu0 0.0
        %915 = vmatpush1.xpose.msra.mxu0 0.0
        %916 = vmatprep.subr.mxu0 0.0
        %917 = vmatpush1.xpose.msra.mxu0 0.0
        %918 = vmatprep.subr.mxu0 0.0
        %919 = vmatpush1.xpose.msra.mxu0 0.0
        %920 = vmatprep.subr.mxu0 0.0
        %921 = vmatpush1.xpose.msra.mxu0 0.0
        %922 = vmatprep.subr.mxu0 0.0
        %923 = vmatpush1.xpose.msra.mxu0 0.0
        %924 = vmatprep.subr.mxu0 0.0
        %925 = vmatpush1.xpose.msra.mxu0 0.0
        %926 = vmatprep.subr.mxu0 0.0
        %927 = vmatpush1.xpose.msra.mxu0 0.0
        %928 = vmatprep.subr.mxu0 0.0
        %929 = vmatpush1.xpose.msra.mxu0 0.0
        %930 = vmatprep.subr.mxu0 0.0
        %931 = vmatpush1.xpose.msra.mxu0 0.0
        %932 = vmatprep.subr.mxu0 0.0
        %933 = vmatpush1.xpose.msra.mxu0 0.0
        %934 = vmatprep.subr.mxu0 0.0
        %935 = vmatpush1.xpose.msra.mxu0 0.0
        %936 = vmatprep.subr.mxu0 0.0
        %937 = vmatpush1.xpose.msra.mxu0 0.0
        %938 = vmatprep.subr.mxu0 0.0
        %939 = vmatpush1.xpose.msra.mxu0 0.0
        %940 = vmatprep.subr.mxu0 0.0
        %941 = vmatpush1.xpose.msra.mxu0 0.0
        %942 = vmatprep.subr.mxu0 0.0
        %943 = vmatpush1.xpose.msra.mxu0 0.0
        %944 = vmatprep.subr.mxu0 0.0
        %945 = vmatpush1.xpose.msra.mxu0 0.0
        %946 = vmatprep.subr.mxu0 0.0
        %947 = vmatpush1.xpose.msra.mxu0 0.0
        %948 = vmatprep.subr.mxu0 0.0
        %949 = vmatpush1.xpose.msra.mxu0 0.0
        %950 = vmatprep.subr.mxu0 0.0
        %951 = vmatpush1.xpose.msra.mxu0 0.0
        %952 = vmatprep.subr.mxu0 0.0
        %953 = vmatpush1.xpose.msra.mxu0 0.0
        %954 = vmatprep.subr.mxu0 0.0
        %955 = vmatpush1.xpose.msra.mxu0 0.0
        %956 = vmatprep.subr.mxu0 0.0
        %957 = vmatpush1.xpose.msra.mxu0 0.0
        %958 = vmatprep.subr.mxu0 0.0
        %959 = vmatpush1.xpose.msra.mxu0 0.0
        %960 = vmatprep.subr.mxu0 0.0
        %961 = vmatpush1.xpose.msra.mxu0 0.0
        %962 = vmatprep.subr.mxu0 0.0
        %963 = vmatpush1.xpose.msra.mxu0 0.0
        %964 = vmatprep.subr.mxu0 0.0
        %965 = vmatpush1.xpose.msra.mxu0 0.0
        %966 = vmatprep.subr.mxu0 0.0
        %967 = vmatpush1.xpose.msra.mxu0 0.0
        %968 = vmatprep.subr.mxu0 0.0
        %969 = vmatpush1.xpose.msra.mxu0 0.0
        %970 = vmatprep.mubr.f32.mxu0 0.0
        %971 = vmatmul.mubr.f32.gmra.mrb[0].mxu0 %v902
        %v972 = vpop.f32.mrb[0].mxu0
        %v973 = vadd.f32 0.0, %v972
        %v974 = vpop.f32.mrb[0].mxu0
        %975 = vdwg.mxu0
        %v976 = vsel %vm557, %v973, -1e+30
        %v977 = vsel %vm561, %v976, -inf
        %978 = vmax.xlane.f32.xlu0 %v977
        %v979 = vpop.xlane.xlu0 %978
        %v980 = vsub.f32 %v976, %v979
        %v981 = vmul.f32 %v980, 1.442695
        %v982 = vpow.pop %v981
        %v983 = vsel %vm561, %v982, 0.0
        %984 = vadd.xlane.f32.xlu0 %v983
        %v985 = vpop.xlane.xlu0 %984
        %v986 = vrcp.pop %v985
        %987 = vrot.lane.b32.xlu0 %v549, 48
        %v988 = vpop.permute.xlu0 %987
        %v991 = vsel %vm561, %v982, 0
        %993 = vmatprep.subr.mxu0 0.0
        %994 = vmatpush1.msra.mxu0 %v988
        %995 = vmatprep.subr.mxu0 0.0
        %996 = vmatpush1.msra.mxu0 0.0
        %997 = vmatprep.subr.mxu0 0.0
        %998 = vmatpush1.msra.mxu0 0.0
        %999 = vmatprep.subr.mxu0 0.0
        %1000 = vmatpush1.msra.mxu0 0.0
        %1001 = vmatprep.subr.mxu0 0.0
        %1002 = vmatpush1.msra.mxu0 0.0
        %1003 = vmatprep.subr.mxu0 0.0
        %1004 = vmatpush1.msra.mxu0 0.0
        %1005 = vmatprep.subr.mxu0 0.0
        %1006 = vmatpush1.msra.mxu0 0.0
        %1007 = vmatprep.subr.mxu0 0.0
        %1008 = vmatpush1.msra.mxu0 0.0
        %1009 = vmatprep.subr.mxu0 0.0
        %1010 = vmatpush1.msra.mxu0 0.0
        %1011 = vmatprep.subr.mxu0 0.0
        %1012 = vmatpush1.msra.mxu0 0.0
        %1013 = vmatprep.subr.mxu0 0.0
        %1014 = vmatpush1.msra.mxu0 0.0
        %1015 = vmatprep.subr.mxu0 0.0
        %1016 = vmatpush1.msra.mxu0 0.0
        %1017 = vmatprep.subr.mxu0 0.0
        %1018 = vmatpush1.msra.mxu0 0.0
        %1019 = vmatprep.subr.mxu0 0.0
        %1020 = vmatpush1.msra.mxu0 0.0
        %1021 = vmatprep.subr.mxu0 0.0
        %1022 = vmatpush1.msra.mxu0 0.0
        %1023 = vmatprep.subr.mxu0 0.0
        %1024 = vmatpush1.msra.mxu0 0.0
        %1025 = vmatprep.subr.mxu0 0.0
        %1026 = vmatpush1.msra.mxu0 0.0
        %1027 = vmatprep.subr.mxu0 0.0
        %1028 = vmatpush1.msra.mxu0 0.0
        %1029 = vmatprep.subr.mxu0 0.0
        %1030 = vmatpush1.msra.mxu0 0.0
        %1031 = vmatprep.subr.mxu0 0.0
        %1032 = vmatpush1.msra.mxu0 0.0
        %1033 = vmatprep.subr.mxu0 0.0
        %1034 = vmatpush1.msra.mxu0 0.0
        %1035 = vmatprep.subr.mxu0 0.0
        %1036 = vmatpush1.msra.mxu0 0.0
        %1037 = vmatprep.subr.mxu0 0.0
        %1038 = vmatpush1.msra.mxu0 0.0
        %1039 = vmatprep.subr.mxu0 0.0
        %1040 = vmatpush1.msra.mxu0 0.0
        %1041 = vmatprep.subr.mxu0 0.0
        %1042 = vmatpush1.msra.mxu0 0.0
        %1043 = vmatprep.subr.mxu0 0.0
        %1044 = vmatpush1.msra.mxu0 0.0
        %1045 = vmatprep.subr.mxu0 0.0
        %1046 = vmatpush1.msra.mxu0 0.0
        %1047 = vmatprep.subr.mxu0 0.0
        %1048 = vmatpush1.msra.mxu0 0.0
        %1049 = vmatprep.subr.mxu0 0.0
        %1050 = vmatpush1.msra.mxu0 0.0
        %1051 = vmatprep.subr.mxu0 0.0
        %1052 = vmatpush1.msra.mxu0 0.0
        %1053 = vmatprep.subr.mxu0 0.0
        %1054 = vmatpush1.msra.mxu0 0.0
        %1055 = vmatprep.subr.mxu0 0.0
        %1056 = vmatpush1.msra.mxu0 0.0
        %1057 = vmatprep.mubr.f32.mxu0 0.0
        %1058 = vmatmul.mubr.f32.gmra.mrb[0].mxu0 %v991
        %v1059 = vpop.f32.mrb[0].mxu0
        %v1060 = vadd.f32 0.0, %v1059
        %v1061 = vpop.f32.mrb[0].mxu0
        %1062 = vdwg.mxu0
        %v1063 = vmul.f32 %v1060, %v986
        %1065 = vrot.lane.b32.xlu0 %v1063, 16
        %v1066 = vpop.permute.xlu0 %1065
        %vm1068 = vcmask 195712
        %1069 = vst.msk [vmem:[#allocation2] sm:$0xff] %vm1068, %v1066
        %1070 = vrot.lane.b32.xlu0 %v552, 104
        %v1071 = vpop.permute.xlu0 %1070
        %1072 = vrot.lane.b32.xlu0 %v549, 72
        %v1073 = vpop.permute.xlu0 %1072
        %v1074 = vsel %vm561, %v1071, 0
        %v1076 = vsel %vm561, %v1073, 0
        %1078 = vmatprep.subr.mxu0 0.0
        %1079 = vmatpush1.xpose.msra.mxu0 %v1076
        %1080 = vmatprep.subr.mxu0 0.0
        %1081 = vmatpush1.xpose.msra.mxu0 0.0
        %1082 = vmatprep.subr.mxu0 0.0
        %1083 = vmatpush1.xpose.msra.mxu0 0.0
        %1084 = vmatprep.subr.mxu0 0.0
        %1085 = vmatpush1.xpose.msra.mxu0 0.0
        %1086 = vmatprep.subr.mxu0 0.0
        %1087 = vmatpush1.xpose.msra.mxu0 0.0
        %1088 = vmatprep.subr.mxu0 0.0
        %1089 = vmatpush1.xpose.msra.mxu0 0.0
        %1090 = vmatprep.subr.mxu0 0.0
        %1091 = vmatpush1.xpose.msra.mxu0 0.0
        %1092 = vmatprep.subr.mxu0 0.0
        %1093 = vmatpush1.xpose.msra.mxu0 0.0
        %1094 = vmatprep.subr.mxu0 0.0
        %1095 = vmatpush1.xpose.msra.mxu0 0.0
        %1096 = vmatprep.subr.mxu0 0.0
        %1097 = vmatpush1.xpose.msra.mxu0 0.0
        %1098 = vmatprep.subr.mxu0 0.0
        %1099 = vmatpush1.xpose.msra.mxu0 0.0
        %1100 = vmatprep.subr.mxu0 0.0
        %1101 = vmatpush1.xpose.msra.mxu0 0.0
        %1102 = vmatprep.subr.mxu0 0.0
        %1103 = vmatpush1.xpose.msra.mxu0 0.0
        %1104 = vmatprep.subr.mxu0 0.0
        %1105 = vmatpush1.xpose.msra.mxu0 0.0
        %1106 = vmatprep.subr.mxu0 0.0
        %1107 = vmatpush1.xpose.msra.mxu0 0.0
        %1108 = vmatprep.subr.mxu0 0.0
        %1109 = vmatpush1.xpose.msra.mxu0 0.0
        %1110 = vmatprep.subr.mxu0 0.0
        %1111 = vmatpush1.xpose.msra.mxu0 0.0
        %1112 = vmatprep.subr.mxu0 0.0
        %1113 = vmatpush1.xpose.msra.mxu0 0.0
        %1114 = vmatprep.subr.mxu0 0.0
        %1115 = vmatpush1.xpose.msra.mxu0 0.0
        %1116 = vmatprep.subr.mxu0 0.0
        %1117 = vmatpush1.xpose.msra.mxu0 0.0
        %1118 = vmatprep.subr.mxu0 0.0
        %1119 = vmatpush1.xpose.msra.mxu0 0.0
        %1120 = vmatprep.subr.mxu0 0.0
        %1121 = vmatpush1.xpose.msra.mxu0 0.0
        %1122 = vmatprep.subr.mxu0 0.0
        %1123 = vmatpush1.xpose.msra.mxu0 0.0
        %1124 = vmatprep.subr.mxu0 0.0
        %1125 = vmatpush1.xpose.msra.mxu0 0.0
        %1126 = vmatprep.subr.mxu0 0.0
        %1127 = vmatpush1.xpose.msra.mxu0 0.0
        %1128 = vmatprep.subr.mxu0 0.0
        %1129 = vmatpush1.xpose.msra.mxu0 0.0
        %1130 = vmatprep.subr.mxu0 0.0
        %1131 = vmatpush1.xpose.msra.mxu0 0.0
        %1132 = vmatprep.subr.mxu0 0.0
        %1133 = vmatpush1.xpose.msra.mxu0 0.0
        %1134 = vmatprep.subr.mxu0 0.0
        %1135 = vmatpush1.xpose.msra.mxu0 0.0
        %1136 = vmatprep.subr.mxu0 0.0
        %1137 = vmatpush1.xpose.msra.mxu0 0.0
        %1138 = vmatprep.subr.mxu0 0.0
        %1139 = vmatpush1.xpose.msra.mxu0 0.0
        %1140 = vmatprep.subr.mxu0 0.0
        %1141 = vmatpush1.xpose.msra.mxu0 0.0
        %1142 = vmatprep.mubr.f32.mxu0 0.0
        %1143 = vmatmul.mubr.f32.gmra.mrb[0].mxu0 %v1074
        %v1144 = vpop.f32.mrb[0].mxu0
        %v1145 = vadd.f32 0.0, %v1144
        %v1146 = vpop.f32.mrb[0].mxu0
        %1147 = vdwg.mxu0
        %v1148 = vsel %vm557, %v1145, -1e+30
        %v1149 = vsel %vm561, %v1148, -inf
        %1150 = vmax.xlane.f32.xlu0 %v1149
        %v1151 = vpop.xlane.xlu0 %1150
        %v1152 = vsub.f32 %v1148, %v1151
        %v1153 = vmul.f32 %v1152, 1.442695
        %v1154 = vpow.pop %v1153
        %v1155 = vsel %vm561, %v1154, 0.0
        %1156 = vadd.xlane.f32.xlu0 %v1155
        %v1157 = vpop.xlane.xlu0 %1156
        %v1158 = vrcp.pop %v1157
        %1159 = vrot.lane.b32.xlu0 %v549, 40
        %v1160 = vpop.permute.xlu0 %1159
        %v1163 = vsel %vm561, %v1154, 0
        %1165 = vmatprep.subr.mxu0 0.0
        %1166 = vmatpush1.msra.mxu0 %v1160
        %1167 = vmatprep.subr.mxu0 0.0
        %1168 = vmatpush1.msra.mxu0 0.0
        %1169 = vmatprep.subr.mxu0 0.0
        %1170 = vmatpush1.msra.mxu0 0.0
        %1171 = vmatprep.subr.mxu0 0.0
        %1172 = vmatpush1.msra.mxu0 0.0
        %1173 = vmatprep.subr.mxu0 0.0
        %1174 = vmatpush1.msra.mxu0 0.0
        %1175 = vmatprep.subr.mxu0 0.0
        %1176 = vmatpush1.msra.mxu0 0.0
        %1177 = vmatprep.subr.mxu0 0.0
        %1178 = vmatpush1.msra.mxu0 0.0
        %1179 = vmatprep.subr.mxu0 0.0
        %1180 = vmatpush1.msra.mxu0 0.0
        %1181 = vmatprep.subr.mxu0 0.0
        %1182 = vmatpush1.msra.mxu0 0.0
        %1183 = vmatprep.subr.mxu0 0.0
        %1184 = vmatpush1.msra.mxu0 0.0
        %1185 = vmatprep.subr.mxu0 0.0
        %1186 = vmatpush1.msra.mxu0 0.0
        %1187 = vmatprep.subr.mxu0 0.0
        %1188 = vmatpush1.msra.mxu0 0.0
        %1189 = vmatprep.subr.mxu0 0.0
        %1190 = vmatpush1.msra.mxu0 0.0
        %1191 = vmatprep.subr.mxu0 0.0
        %1192 = vmatpush1.msra.mxu0 0.0
        %1193 = vmatprep.subr.mxu0 0.0
        %1194 = vmatpush1.msra.mxu0 0.0
        %1195 = vmatprep.subr.mxu0 0.0
        %1196 = vmatpush1.msra.mxu0 0.0
        %1197 = vmatprep.subr.mxu0 0.0
        %1198 = vmatpush1.msra.mxu0 0.0
        %1199 = vmatprep.subr.mxu0 0.0
        %1200 = vmatpush1.msra.mxu0 0.0
        %1201 = vmatprep.subr.mxu0 0.0
        %1202 = vmatpush1.msra.mxu0 0.0
        %1203 = vmatprep.subr.mxu0 0.0
        %1204 = vmatpush1.msra.mxu0 0.0
        %1205 = vmatprep.subr.mxu0 0.0
        %1206 = vmatpush1.msra.mxu0 0.0
        %1207 = vmatprep.subr.mxu0 0.0
        %1208 = vmatpush1.msra.mxu0 0.0
        %1209 = vmatprep.subr.mxu0 0.0
        %1210 = vmatpush1.msra.mxu0 0.0
        %1211 = vmatprep.subr.mxu0 0.0
        %1212 = vmatpush1.msra.mxu0 0.0
        %1213 = vmatprep.subr.mxu0 0.0
        %1214 = vmatpush1.msra.mxu0 0.0
        %1215 = vmatprep.subr.mxu0 0.0
        %1216 = vmatpush1.msra.mxu0 0.0
        %1217 = vmatprep.subr.mxu0 0.0
        %1218 = vmatpush1.msra.mxu0 0.0
        %1219 = vmatprep.subr.mxu0 0.0
        %1220 = vmatpush1.msra.mxu0 0.0
        %1221 = vmatprep.subr.mxu0 0.0
        %1222 = vmatpush1.msra.mxu0 0.0
        %1223 = vmatprep.subr.mxu0 0.0
        %1224 = vmatpush1.msra.mxu0 0.0
        %1225 = vmatprep.subr.mxu0 0.0
        %1226 = vmatpush1.msra.mxu0 0.0
        %1227 = vmatprep.subr.mxu0 0.0
        %1228 = vmatpush1.msra.mxu0 0.0
        %1229 = vmatprep.mubr.f32.mxu0 0.0
        %1230 = vmatmul.mubr.f32.gmra.mrb[0].mxu0 %v1163
        %v1231 = vpop.f32.mrb[0].mxu0
        %v1232 = vadd.f32 0.0, %v1231
        %v1233 = vpop.f32.mrb[0].mxu0
        %1234 = vdwg.mxu0
        %v1235 = vmul.f32 %v1232, %v1158
        %1237 = vrot.lane.b32.xlu0 %v1235, 24
        %v1238 = vpop.permute.xlu0 %1237
        %vm1240 = vcmask 261312
        %1241 = vst.msk [vmem:[#allocation2] sm:$0xff] %vm1240, %v1238
        %v1242 = vld [vmem:[#allocation2] sm:$0xff]
        %v1243 = vld [vmem:[%s5] sm:$0xff]
        %v1244 = vld [vmem:[%s5 + $0x8] sm:$0xff]
        %v1245 = vld [vmem:[%s5 + $0x10] sm:$0xff]
        %v1246 = vld [vmem:[%s5 + $0x18] sm:$0xff]
        %v1248 = vsel %vm439, %v1242, 0
        %1250 = vmatprep.subr.mxu0 0.0
        %1251 = vmatpush1.msra.mxu0 %v1243
        %1252 = vmatprep.subr.mxu0 0.0
        %1253 = vmatpush1.msra.mxu0 %v1244
        %1254 = vmatprep.subr.mxu0 0.0
        %1255 = vmatpush1.msra.mxu0 %v1245
        %1256 = vmatprep.subr.mxu0 0.0
        %1257 = vmatpush1.msra.mxu0 %v1246
        %1258 = vmatprep.subr.mxu0 0.0
        %1259 = vmatpush1.msra.mxu0 0.0
        %1260 = vmatprep.subr.mxu0 0.0
        %1261 = vmatpush1.msra.mxu0 0.0
        %1262 = vmatprep.subr.mxu0 0.0
        %1263 = vmatpush1.msra.mxu0 0.0
        %1264 = vmatprep.subr.mxu0 0.0
        %1265 = vmatpush1.msra.mxu0 0.0
        %1266 = vmatprep.subr.mxu0 0.0
        %1267 = vmatpush1.msra.mxu0 0.0
        %1268 = vmatprep.subr.mxu0 0.0
        %1269 = vmatpush1.msra.mxu0 0.0
        %1270 = vmatprep.subr.mxu0 0.0
        %1271 = vmatpush1.msra.mxu0 0.0
        %1272 = vmatprep.subr.mxu0 0.0
        %1273 = vmatpush1.msra.mxu0 0.0
        %1274 = vmatprep.subr.mxu0 0.0
        %1275 = vmatpush1.msra.mxu0 0.0
        %1276 = vmatprep.subr.mxu0 0.0
        %1277 = vmatpush1.msra.mxu0 0.0
        %1278 = vmatprep.subr.mxu0 0.0
        %1279 = vmatpush1.msra.mxu0 0.0
        %1280 = vmatprep.subr.mxu0 0.0
        %1281 = vmatpush1.msra.mxu0 0.0
        %1282 = vmatprep.subr.mxu0 0.0
        %1283 = vmatpush1.msra.mxu0 0.0
        %1284 = vmatprep.subr.mxu0 0.0
        %1285 = vmatpush1.msra.mxu0 0.0
        %1286 = vmatprep.subr.mxu0 0.0
        %1287 = vmatpush1.msra.mxu0 0.0
        %1288 = vmatprep.subr.mxu0 0.0
        %1289 = vmatpush1.msra.mxu0 0.0
        %1290 = vmatprep.subr.mxu0 0.0
        %1291 = vmatpush1.msra.mxu0 0.0
        %1292 = vmatprep.subr.mxu0 0.0
        %1293 = vmatpush1.msra.mxu0 0.0
        %1294 = vmatprep.subr.mxu0 0.0
        %1295 = vmatpush1.msra.mxu0 0.0
        %1296 = vmatprep.subr.mxu0 0.0
        %1297 = vmatpush1.msra.mxu0 0.0
        %1298 = vmatprep.subr.mxu0 0.0
        %1299 = vmatpush1.msra.mxu0 0.0
        %1300 = vmatprep.subr.mxu0 0.0
        %1301 = vmatpush1.msra.mxu0 0.0
        %1302 = vmatprep.subr.mxu0 0.0
        %1303 = vmatpush1.msra.mxu0 0.0
        %1304 = vmatprep.subr.mxu0 0.0
        %1305 = vmatpush1.msra.mxu0 0.0
        %1306 = vmatprep.subr.mxu0 0.0
        %1307 = vmatpush1.msra.mxu0 0.0
        %1308 = vmatprep.subr.mxu0 0.0
        %1309 = vmatpush1.msra.mxu0 0.0
        %1310 = vmatprep.subr.mxu0 0.0
        %1311 = vmatpush1.msra.mxu0 0.0
        %1312 = vmatprep.subr.mxu0 0.0
        %1313 = vmatpush1.msra.mxu0 0.0
        %1314 = vmatprep.mubr.f32.mxu0 0.0
        %1315 = vmatmul.mubr.f32.gmra.mrb[0].mxu0 %v1248
        %v1316 = vpop.f32.mrb[0].mxu0
        %v1317 = vadd.f32 0.0, %v1316
        %v1318 = vpop.f32.mrb[0].mxu0
        %1319 = vdwg.mxu0
        %v1320 = vadd.f32 %v436, %v1317
        %v1321 = vld [vmem:[%s6] sm:$0x1]
        %v1323 = vlaneseq
        %v1324 = vshrl.u32 %v1323, 7
        %v1325 = vsub.s32 0, %v1324
        %v1326 = vrot.slane %v1321, %v1325
        %v1328 = vadd.f32 %v1320, %v1326
        %v1329 = vld [vmem:[%s7] sm:$0x1]
        %v1330 = vld [vmem:[%s8] sm:$0x1]
        %v1331 = vsel %vm439, %v1328, 0.0
        %1332 = vadd.xlane.f32.xlu0 %v1331
        %v1333 = vpop.xlane.xlu0 %1332
        %v1334 = vmul.f32 %v1333, %v443
        %v1335 = vsub.f32 %v1328, %v1334
        %v1336 = vmul.f32 %v1335, %v1335
        %v1337 = vsel %vm439, %v1336, 0.0
        %1338 = vadd.xlane.f32.xlu0 %v1337
        %v1339 = vpop.xlane.xlu0 %1338
        %v1340 = vmul.f32 %v1339, %v443
        %v1341 = vadd.f32 %v1340, 1e-05
        %v1342 = vrsqrt.pop %v1341
        %v1343 = vmul.f32 %v1335, %v1342
        %v1345 = vlaneseq
        %v1346 = vshrl.u32 %v1345, 7
        %v1347 = vsub.s32 0, %v1346
        %v1348 = vrot.slane %v1329, %v1347
        %v1350 = vmul.f32 %v1343, %v1348
        %v1352 = vlaneseq
        %v1353 = vshrl.u32 %v1352, 7
        %v1354 = vsub.s32 0, %v1353
        %v1355 = vrot.slane %v1330, %v1354
        %v1357 = vadd.f32 %v1350, %v1355
        %v1358 = vld [vmem:[%s9] sm:$0xff]
        %v1359 = vld [vmem:[%s9 + $0x8] sm:$0xff]
        %v1360 = vld [vmem:[%s9 + $0x10] sm:$0xff]
        %v1361 = vld [vmem:[%s9 + $0x18] sm:$0xff]
        %v1362 = vld [vmem:[%s10] sm:$0x1]
        %v1364 = vlaneseq
        %v1365 = vshrl.u32 %v1364, 7
        %v1366 = vsub.s32 0, %v1365
        %v1367 = vrot.slane %v1362, %v1366
        %v1370 = vsel %vm439, %v1357, 0
        %1372 = vmatprep.subr.mxu0 0.0
        %1373 = vmatpush1.msra.mxu0 %v1358
        %1374 = vmatprep.subr.mxu0 0.0
        %1375 = vmatpush1.msra.mxu0 %v1359
        %1376 = vmatprep.subr.mxu0 0.0
        %1377 = vmatpush1.msra.mxu0 %v1360
        %1378 = vmatprep.subr.mxu0 0.0
        %1379 = vmatpush1.msra.mxu0 %v1361
        %1380 = vmatprep.subr.mxu0 0.0
        %1381 = vmatpush1.msra.mxu0 0.0
        %1382 = vmatprep.subr.mxu0 0.0
        %1383 = vmatpush1.msra.mxu0 0.0
        %1384 = vmatprep.subr.mxu0 0.0
        %1385 = vmatpush1.msra.mxu0 0.0
        %1386 = vmatprep.subr.mxu0 0.0
        %1387 = vmatpush1.msra.mxu0 0.0
        %1388 = vmatprep.subr.mxu0 0.0
        %1389 = vmatpush1.msra.mxu0 0.0
        %1390 = vmatprep.subr.mxu0 0.0
        %1391 = vmatpush1.msra.mxu0 0.0
        %1392 = vmatprep.subr.mxu0 0.0
        %1393 = vmatpush1.msra.mxu0 0.0
        %1394 = vmatprep.subr.mxu0 0.0
        %1395 = vmatpush1.msra.mxu0 0.0
        %1396 = vmatprep.subr.mxu0 0.0
        %1397 = vmatpush1.msra.mxu0 0.0
        %1398 = vmatprep.subr.mxu0 0.0
        %1399 = vmatpush1.msra.mxu0 0.0
        %1400 = vmatprep.subr.mxu0 0.0
        %1401 = vmatpush1.msra.mxu0 0.0
        %1402 = vmatprep.subr.mxu0 0.0
        %1403 = vmatpush1.msra.mxu0 0.0
        %1404 = vmatprep.subr.mxu0 0.0
        %1405 = vmatpush1.msra.mxu0 0.0
        %1406 = vmatprep.subr.mxu0 0.0
        %1407 = vmatpush1.msra.mxu0 0.0
        %1408 = vmatprep.subr.mxu0 0.0
        %1409 = vmatpush1.msra.mxu0 0.0
        %1410 = vmatprep.subr.mxu0 0.0
        %1411 = vmatpush1.msra.mxu0 0.0
        %1412 = vmatprep.subr.mxu0 0.0
        %1413 = vmatpush1.msra.mxu0 0.0
        %1414 = vmatprep.subr.mxu0 0.0
        %1415 = vmatpush1.msra.mxu0 0.0
        %1416 = vmatprep.subr.mxu0 0.0
        %1417 = vmatpush1.msra.mxu0 0.0
        %1418 = vmatprep.subr.mxu0 0.0
        %1419 = vmatpush1.msra.mxu0 0.0
        %1420 = vmatprep.subr.mxu0 0.0
        %1421 = vmatpush1.msra.mxu0 0.0
        %1422 = vmatprep.subr.mxu0 0.0
        %1423 = vmatpush1.msra.mxu0 0.0
        %1424 = vmatprep.subr.mxu0 0.0
        %1425 = vmatpush1.msra.mxu0 0.0
        %1426 = vmatprep.subr.mxu0 0.0
        %1427 = vmatpush1.msra.mxu0 0.0
        %1428 = vmatprep.subr.mxu0 0.0
        %1429 = vmatpush1.msra.mxu0 0.0
        %1430 = vmatprep.subr.mxu0 0.0
        %1431 = vmatpush1.msra.mxu0 0.0
        %1432 = vmatprep.subr.mxu0 0.0
        %1433 = vmatpush1.msra.mxu0 0.0
        %1434 = vmatprep.subr.mxu0 0.0
        %1435 = vmatpush1.msra.mxu0 0.0
        %1436 = vmatprep.mubr.f32.mxu0 0.0
        %1437 = vmatmul.mubr.f32.gmra.mrb[0].mxu0 %v1370
        %v1438 = vpop.f32.mrb[0].mxu0
        %v1439 = vadd.f32 %v1367, %v1438
        %v1440 = vpop.f32.mrb[0].mxu0
        %1441 = vdwg.mxu0
        %v1442 = vmul.f32 %v1439, 0.5
        %v1443 = vmul.f32 %v1439, 0.044715
        %v1444 = vmul.f32 %v1443, %v1439
        %v1445 = vmul.f32 %v1444, %v1439
        %v1446 = vadd.f32 %v1439, %v1445
        %v1447 = vmul.f32 %v1446, 0.7978846
        %v1448 = vtanh.pop %v1447
        %v1449 = vadd.f32 %v1448, 1.0
        %v1450 = vmul.f32 %v1442, %v1449
        %v1451 = vld [vmem:[%s11] sm:$0xff]
        %v1452 = vld [vmem:[%s11 + $0x8] sm:$0xff]
        %v1453 = vld [vmem:[%s11 + $0x10] sm:$0xff]
        %v1454 = vld [vmem:[%s11 + $0x18] sm:$0xff]
        %v1455 = vld [vmem:[%s11 + $0x20] sm:$0xff]
        %v1456 = vld [vmem:[%s11 + $0x28] sm:$0xff]
        %v1457 = vld [vmem:[%s11 + $0x30] sm:$0xff]
        %v1458 = vld [vmem:[%s11 + $0x38] sm:$0xff]
        %v1459 = vld [vmem:[%s11 + $0x40] sm:$0xff]
        %v1460 = vld [vmem:[%s11 + $0x48] sm:$0xff]
        %v1461 = vld [vmem:[%s11 + $0x50] sm:$0xff]
        %v1462 = vld [vmem:[%s11 + $0x58] sm:$0xff]
        %v1463 = vld [vmem:[%s11 + $0x60] sm:$0xff]
        %v1464 = vld [vmem:[%s11 + $0x68] sm:$0xff]
        %v1465 = vld [vmem:[%s11 + $0x70] sm:$0xff]
        %v1466 = vld [vmem:[%s11 + $0x78] sm:$0xff]
        %1467 = vmatprep.subr.mxu0 0.0
        %1468 = vmatpush1.msra.mxu0 %v1451
        %1469 = vmatprep.subr.mxu0 0.0
        %1470 = vmatpush1.msra.mxu0 %v1452
        %1471 = vmatprep.subr.mxu0 0.0
        %1472 = vmatpush1.msra.mxu0 %v1453
        %1473 = vmatprep.subr.mxu0 0.0
        %1474 = vmatpush1.msra.mxu0 %v1454
        %1475 = vmatprep.subr.mxu0 0.0
        %1476 = vmatpush1.msra.mxu0 %v1455
        %1477 = vmatprep.subr.mxu0 0.0
        %1478 = vmatpush1.msra.mxu0 %v1456
        %1479 = vmatprep.subr.mxu0 0.0
        %1480 = vmatpush1.msra.mxu0 %v1457
        %1481 = vmatprep.subr.mxu0 0.0
        %1482 = vmatpush1.msra.mxu0 %v1458
        %1483 = vmatprep.subr.mxu0 0.0
        %1484 = vmatpush1.msra.mxu0 %v1459
        %1485 = vmatprep.subr.mxu0 0.0
        %1486 = vmatpush1.msra.mxu0 %v1460
        %1487 = vmatprep.subr.mxu0 0.0
        %1488 = vmatpush1.msra.mxu0 %v1461
        %1489 = vmatprep.subr.mxu0 0.0
        %1490 = vmatpush1.msra.mxu0 %v1462
        %1491 = vmatprep.subr.mxu0 0.0
        %1492 = vmatpush1.msra.mxu0 %v1463
        %1493 = vmatprep.subr.mxu0 0.0
        %1494 = vmatpush1.msra.mxu0 %v1464
        %1495 = vmatprep.subr.mxu0 0.0
        %1496 = vmatpush1.msra.mxu0 %v1465
        %1497 = vmatprep.subr.mxu0 0.0
        %1498 = vmatpush1.msra.mxu0 %v1466
        %1499 = vmatprep.subr.mxu0 0.0
        %1500 = vmatpush1.msra.mxu0 0.0
        %1501 = vmatprep.subr.mxu0 0.0
        %1502 = vmatpush1.msra.mxu0 0.0
        %1503 = vmatprep.subr.mxu0 0.0
        %1504 = vmatpush1.msra.mxu0 0.0
        %1505 = vmatprep.subr.mxu0 0.0
        %1506 = vmatpush1.msra.mxu0 0.0
        %1507 = vmatprep.subr.mxu0 0.0
        %1508 = vmatpush1.msra.mxu0 0.0
        %1509 = vmatprep.subr.mxu0 0.0
        %1510 = vmatpush1.msra.mxu0 0.0
        %1511 = vmatprep.subr.mxu0 0.0
        %1512 = vmatpush1.msra.mxu0 0.0
        %1513 = vmatprep.subr.mxu0 0.0
        %1514 = vmatpush1.msra.mxu0 0.0
        %1515 = vmatprep.subr.mxu0 0.0
        %1516 = vmatpush1.msra.mxu0 0.0
        %1517 = vmatprep.subr.mxu0 0.0
        %1518 = vmatpush1.msra.mxu0 0.0
        %1519 = vmatprep.subr.mxu0 0.0
        %1520 = vmatpush1.msra.mxu0 0.0
        %1521 = vmatprep.subr.mxu0 0.0
        %1522 = vmatpush1.msra.mxu0 0.0
        %1523 = vmatprep.subr.mxu0 0.0
        %1524 = vmatpush1.msra.mxu0 0.0
        %1525 = vmatprep.subr.mxu0 0.0
        %1526 = vmatpush1.msra.mxu0 0.0
        %1527 = vmatprep.subr.mxu0 0.0
        %1528 = vmatpush1.msra.mxu0 0.0
        %1529 = vmatprep.subr.mxu0 0.0
        %1530 = vmatpush1.msra.mxu0 0.0
        %1531 = vmatprep.mubr.f32.mxu0 0.0
        %1532 = vmatmul.mubr.f32.gmra.mrb[0].mxu0 %v1450
        %v1533 = vpop.f32.mrb[0].mxu0
        %v1534 = vadd.f32 0.0, %v1533
        %v1535 = vpop.f32.mrb[0].mxu0
        %1536 = vdwg.mxu0
        %v1537 = vadd.f32 %v1328, %v1534
        %v1538 = vld [vmem:[%s12] sm:$0x1]
        %v1540 = vlaneseq
        %v1541 = vshrl.u32 %v1540, 7
        %v1542 = vsub.s32 0, %v1541
        %v1543 = vrot.slane %v1538, %v1542
        %v1545 = vadd.f32 %v1537, %v1543
        %1546 = vst.msk [vmem:[%s431] sm:$0xff] %vm439, %v1545
        %s1547 = sand.u32 %s313, 1
        %s1548 = scalar_lea.sflag [#allocation4], %s1547
        %s1549 = sand.u32 %s313, 1
        %s1550 = smul.addr %s1549, 8
        %s1551 = scalar_lea.vmem [#allocation3], %s1550
        // Predicated region
        $region73: #{tpu_custom_call.1} parent=71 // pred_check
          %p1552 = pneg %p323
        $region74: #{tpu_custom_call.1} parent=71 // pred_check_branch
          %1554 = sbr.rel (%p1552) target = $region76
        $region75: #{tpu_custom_call.1} parent=71 // pred_region
          %s1556 = ssub.s32 128, 128
          %1557 = vsyncadd %s1548, %s1556
          %s1558 = smul.addr %s27, 128
          %s1559 = scalar_lea.hbm %s13, %s1558
          %s1561 = sshll.u32 %s1551, 4
          %s1562 = int_to_ptr.vmem [resolvable:$true] %s1561
          %1564 = dma.vmem_to_hbm [thread:$0]  %s1562, 128, %s1559, %s1548
        $region76: #{tpu_custom_call.1} parent=71 // pred_fallthru
          _
      $region72: #{tpu_custom_call.1} parent=5 // pred_fallthru
        _
      %p1565 = scmp.le.s32.totalorder 2, %s22
      // Predicated region
      $region77: #{tpu_custom_call.1} parent=5 // pred_check
        %p1566 = pneg %p1565
      $region78: #{tpu_custom_call.1} parent=5 // pred_check_branch
        %1568 = sbr.rel (%p1566) target = $region80
      $region79: #{tpu_custom_call.1} parent=5 // pred_region
        %s1569 = ssub.s32 %s22, 2
        // Predicated region
        $region81: #{tpu_custom_call.1} parent=79 // pred_check
          %p1570 = pneg %p329
        $region82: #{tpu_custom_call.1} parent=79 // pred_check_branch
          %1572 = sbr.rel (%p1570) target = $region84
        $region83: #{tpu_custom_call.1} parent=79 // pred_region
          %s1573 = sand.u32 %s314, 1
          %s1574 = scalar_lea.sflag [#allocation4], %s1573
          %s1575 = sand.u32 %s314, 1
          %s1576 = smul.addr %s1575, 8
          %s1577 = scalar_lea.vmem [#allocation3], %s1576
          %1578 = dma.done %s1574, 128
        $region84: #{tpu_custom_call.1} parent=79 // pred_fallthru
          _
      $region80: #{tpu_custom_call.1} parent=5 // pred_fallthru
        _
    $region6: #{tpu_custom_call.1} parent=1 // loop_footer
      %s26 = sadd.s32 1, %s22
    $region7: #{tpu_custom_call.1} parent=1 // loop_footer_branch
      %21 = sbr.rel target = $region3
    $region8: #{tpu_custom_call.1} parent=1 // loop_exit
      _
    %1579 = vsyncpa [#allocation4], 1
    %s1580 = scalar_lea.sflag [#allocation4], 1
    %1581 = vsyncpa %s1580, 1

</llo_original>
